<compile_context>
chip_gen: v7x
topology: tpu7x:2x2x1
jax: 0.10.0
libtpu: 0.0.40
codegen_flags: <defaults>
</compile_context>

<pallas_src>
import functools

import jax
import jax.numpy as jnp
from jax.experimental import pallas as pl
from jax.experimental.pallas import tpu as pltpu


def _split_heads(x, n_heads, head_dim):
    """(N, n_heads*head_dim) -> (n_heads, N, head_dim) head-major layout.

    Built from static lane-slices + a major-axis concat + major-axis reshape,
    all of which lower cleanly in Mosaic (avoids a lane-splitting reshape
    followed by a sublane/major transpose).
    """
    n = x.shape[0]
    parts = [x[:, h * head_dim:(h + 1) * head_dim] for h in range(n_heads)]
    return jnp.concatenate(parts, axis=0).reshape(n_heads, n, head_dim)


def _mha_kernel(q_ref, k_ref, v_ref,
                wq_ref, bq_ref, wk_ref, bk_ref, wv_ref, bv_ref,
                wo_ref, bo_ref,
                out_ref, *rest,
                n_heads, d_k, d_v, scale, with_attn, compute_dtype):
    """Grid = (batch, query_tile).

    q_ref:  (1, TQ, D)      query tile (compute_dtype)
    k/v_ref:(1, S, D)       full K / V rows for this batch element
    wq/wk/wv: (D, H*dk|dv)  bq/bk/bv: (1, H*dk|dv)  (biases f32)
    wo_ref: (H, dv, D)      head-major output projection; bo: (1, D)
    out_ref: (1, TQ, D);  attn_ref (optional): (1, H, TQ, S)
    scratch: kph (H, S, dk), vph (H, S, dv)  — cached per batch element.
    """
    if with_attn:
        attn_ref, kph_s, vph_s = rest
    else:
        attn_ref = None
        kph_s, vph_s = rest

    qi = pl.program_id(1)

    # --- K / V projections: computed once per batch element (qi == 0), cached
    #     in VMEM scratch in head-major (H, S, d) layout for reuse by every
    #     query tile of this batch element.
    @pl.when(qi == 0)
    def _():
        xk = k_ref[0]                                               # (S, D)
        xv = v_ref[0]
        kp = jnp.dot(xk, wk_ref[...],
                     preferred_element_type=jnp.float32) + bk_ref[...]
        vp = jnp.dot(xv, wv_ref[...],
                     preferred_element_type=jnp.float32) + bv_ref[...]
        kph_s[...] = _split_heads(kp, n_heads, d_k).astype(kph_s.dtype)
        vph_s[...] = _split_heads(vp, n_heads, d_v).astype(vph_s.dtype)

    # --- Q projection for this query tile (scale folded in; lsa=False so scale
    #     is a compile-time constant).
    xq = q_ref[0]                                                   # (TQ, D)
    qp = jnp.dot(xq, wq_ref[...],
                 preferred_element_type=jnp.float32) + bq_ref[...]  # (TQ, H*dk)
    qph = (_split_heads(qp, n_heads, d_k) * scale).astype(compute_dtype)

    # --- heads-batched attention scores: one leading-batch dot_general on the
    #     MXU, no per-head Python loop, no explicit K transpose.
    scores = jnp.einsum('hqd,hkd->hqk', qph, kph_s[...],
                        preferred_element_type=jnp.float32)         # (H, TQ, S)

    # --- numerically stable softmax in f32; division -> EUP approx reciprocal.
    m = jnp.max(scores, axis=-1, keepdims=True)
    e = jnp.exp(scores - m)
    p = e * pl.reciprocal(jnp.sum(e, axis=-1, keepdims=True), approx=True)

    if attn_ref is not None:
        attn_ref[0] = p.astype(attn_ref.dtype)

    # --- P @ V, heads batched.
    ctx = jnp.einsum('hqk,hkd->hqd', p.astype(compute_dtype), vph_s[...],
                     preferred_element_type=jnp.float32)            # (H, TQ, dv)

    # --- output projection: per-head W_O slices applied as one heads-batched
    #     matmul, then accumulated over heads (replaces concat + single dot).
    proj = jnp.einsum('hqd,hdm->hqm', ctx.astype(compute_dtype), wo_ref[...],
                      preferred_element_type=jnp.float32)           # (H, TQ, D)
    out = proj[0]
    for h in range(1, n_heads):                                     # static unroll
        out = out + proj[h]
    out_ref[0] = (out + bo_ref[...]).astype(out_ref.dtype)


def multihead_attention(Q, K, V, params, n_heads, *,
                        q_tile=None,
                        compute_dtype=jnp.bfloat16,
                        attn_dtype=jnp.float32,
                        out_dtype=jnp.float32,
                        return_attn=True):
    """Pallas wrapper reproducing _MultiheadAttention.forward (no masks, no prev).

    Returns (output, attn_weights) like the PyTorch module; attn_weights is None
    when return_attn=False (recommended when the consumer only needs `output`,
    since the dense (bs, H, S, S) writeback dominates HBM traffic at large S).
    """
    bs, S, d_model = Q.shape
    d_k = d_model // n_heads
    d_v = d_model // n_heads
    scale = float(d_k) ** -0.5

    # Query tile: full sequence for small S; 128 (lane/sublane friendly) otherwise.
    if q_tile is None:
        q_tile = S if S <= 128 else 128
    if S % q_tile != 0 or (q_tile != S and q_tile % 8 != 0):
        q_tile = S
    n_q = S // q_tile

    cd = compute_dtype
    Qc = Q.astype(cd)
    Kc = K.astype(cd)
    Vc = V.astype(cd)
    wq = params["wq"].astype(cd)
    wk = params["wk"].astype(cd)
    wv = params["wv"].astype(cd)
    wo3 = params["wo"].reshape(n_heads, d_v, d_model).astype(cd)   # head-major W_O
    bq = params["bq"].astype(jnp.float32)
    bk = params["bk"].astype(jnp.float32)
    bv = params["bv"].astype(jnp.float32)
    bo = params["bo"].astype(jnp.float32)

    kernel = functools.partial(_mha_kernel, n_heads=n_heads, d_k=d_k, d_v=d_v,
                               scale=scale, with_attn=return_attn,
                               compute_dtype=cd)

    def const(shape):
        return pl.BlockSpec(shape, lambda b, q: (0,) * len(shape))

    in_specs = [
        pl.BlockSpec((1, q_tile, d_model), lambda b, q: (b, q, 0)),   # Q tile
        pl.BlockSpec((1, S, d_model), lambda b, q: (b, 0, 0)),        # K (full)
        pl.BlockSpec((1, S, d_model), lambda b, q: (b, 0, 0)),        # V (full)
        const((d_model, n_heads * d_k)), const((1, n_heads * d_k)),   # W_Q, b_Q
        const((d_model, n_heads * d_k)), const((1, n_heads * d_k)),   # W_K, b_K
        const((d_model, n_heads * d_v)), const((1, n_heads * d_v)),   # W_V, b_V
        const((n_heads, d_v, d_model)), const((1, d_model)),          # W_O, b_O
    ]

    out_shapes = [jax.ShapeDtypeStruct((bs, S, d_model), out_dtype)]
    out_specs = [pl.BlockSpec((1, q_tile, d_model), lambda b, q: (b, q, 0))]
    if return_attn:
        out_shapes.append(jax.ShapeDtypeStruct((bs, n_heads, S, S), attn_dtype))
        out_specs.append(
            pl.BlockSpec((1, n_heads, q_tile, S), lambda b, q: (b, 0, q, 0)))

    res = pl.pallas_call(
        kernel,
        out_shape=tuple(out_shapes),
        grid_spec=pltpu.PrefetchScalarGridSpec(
            num_scalar_prefetch=0,
            grid=(bs, n_q),
            in_specs=in_specs,
            out_specs=out_specs,
            scratch_shapes=[
                pltpu.VMEM((n_heads, S, d_k), cd),   # cached head-major K proj
                pltpu.VMEM((n_heads, S, d_v), cd),   # cached head-major V proj
            ]),
        # batch axis parallel (feeds both v7x TensorCores); query-tile axis is
        # "arbitrary" because the K/V projection scratch is carried across it.
        compiler_params=pltpu.CompilerParams(
            dimension_semantics=("parallel", "arbitrary")),
    )(Qc, Kc, Vc, wq, bq, wk, bk, wv, bv, wo3, bo)

    if return_attn:
        return res[0], res[1]
    return res[0], None


def init_params(key, d_model, n_heads):
    d_k = d_v = d_model // n_heads
    ks = jax.random.split(key, 8)
    s = 0.05
    return {
        "wq": s * jax.random.normal(ks[0], (d_model, n_heads * d_k), jnp.float32),
        "bq": s * jax.random.normal(ks[1], (1, n_heads * d_k), jnp.float32),
        "wk": s * jax.random.normal(ks[2], (d_model, n_heads * d_k), jnp.float32),
        "bk": s * jax.random.normal(ks[3], (1, n_heads * d_k), jnp.float32),
        "wv": s * jax.random.normal(ks[4], (d_model, n_heads * d_v), jnp.float32),
        "bv": s * jax.random.normal(ks[5], (1, n_heads * d_v), jnp.float32),
        "wo": s * jax.random.normal(ks[6], (n_heads * d_v, d_model), jnp.float32),
        "bo": s * jax.random.normal(ks[7], (1, d_model), jnp.float32),
    }


def _reference(Q, K, V, p, n_heads, compute_dtype=jnp.bfloat16):
    """Plain-JAX transcription of the PyTorch forward, with the same bf16
    input/weight rounding as the kernel (f32 accumulation) for verification."""
    bs, S, D = Q.shape
    d_k = d_v = D // n_heads
    scale = float(d_k) ** -0.5
    f32 = jnp.float32
    cd = compute_dtype
    Qc = Q.astype(cd).astype(f32)
    Kc = K.astype(cd).astype(f32)
    Vc = V.astype(cd).astype(f32)
    wq = p["wq"].astype(cd).astype(f32)
    wk = p["wk"].astype(cd).astype(f32)
    wv = p["wv"].astype(cd).astype(f32)
    wo = p["wo"].astype(cd).astype(f32)
    q = (Qc @ wq + p["bq"]).reshape(bs, S, n_heads, d_k).transpose(0, 2, 1, 3)
    k = (Kc @ wk + p["bk"]).reshape(bs, S, n_heads, d_k).transpose(0, 2, 3, 1)
    v = (Vc @ wv + p["bv"]).reshape(bs, S, n_heads, d_v).transpose(0, 2, 1, 3)
    scores = jnp.einsum("bhqd,bhdk->bhqk", q, k) * scale
    attn = jax.nn.softmax(scores, axis=-1)
    out = jnp.einsum("bhqk,bhkd->bhqd", attn, v)
    out = out.transpose(0, 2, 1, 3).reshape(bs, S, n_heads * d_v)
    out = out @ wo + p["bo"]
    return out, attn


if __name__ == "__main__":
    bs, S, d_model, n_heads = 2, 8, 32, 4

    key = jax.random.PRNGKey(0)
    kq, kk, kv, kparam = jax.random.split(key, 4)
    Q = jax.random.normal(kq, (bs, S, d_model), jnp.float32)
    K = jax.random.normal(kk, (bs, S, d_model), jnp.float32)
    V = jax.random.normal(kv, (bs, S, d_model), jnp.float32)
    params = init_params(kparam, d_model, n_heads)

    # Full path (returns attention weights, like the PyTorch module).
    out, attn = multihead_attention(Q, K, V, params, n_heads)
    out = jax.block_until_ready(out)
    attn = jax.block_until_ready(attn)

    # Fast path: skip the dense attention-weights writeback.
    out_fast, _ = multihead_attention(Q, K, V, params, n_heads, return_attn=False)
    out_fast = jax.block_until_ready(out_fast)

    ref_out, ref_attn = _reference(Q, K, V, params, n_heads)
    assert out.shape == (bs, S, d_model)
    assert attn.shape == (bs, n_heads, S, S)
    assert jnp.allclose(out, ref_out, atol=2e-2, rtol=2e-2)
    assert jnp.allclose(attn, ref_attn, atol=2e-2, rtol=2e-2)
    assert jnp.allclose(out_fast, ref_out, atol=2e-2, rtol=2e-2)

    print("KERNEL_OK")
</pallas_src>

<mosaic_0001>
module attributes {stable_mosaic.version = 11 : i64} {
  func.func @_mha_kernel(%arg0: i32, %arg1: i32, %arg2: memref<1x8x32xbf16, #tpu.memory_space<vmem>>, %arg3: memref<1x8x32xbf16, #tpu.memory_space<vmem>>, %arg4: memref<1x8x32xbf16, #tpu.memory_space<vmem>>, %arg5: memref<32x32xbf16, #tpu.memory_space<vmem>>, %arg6: memref<1x32xf32, #tpu.memory_space<vmem>>, %arg7: memref<32x32xbf16, #tpu.memory_space<vmem>>, %arg8: memref<1x32xf32, #tpu.memory_space<vmem>>, %arg9: memref<32x32xbf16, #tpu.memory_space<vmem>>, %arg10: memref<1x32xf32, #tpu.memory_space<vmem>>, %arg11: memref<4x8x32xbf16, #tpu.memory_space<vmem>>, %arg12: memref<1x32xf32, #tpu.memory_space<vmem>>, %arg13: memref<1x8x32xf32, #tpu.memory_space<vmem>>, %arg14: memref<1x4x8x8xf32, #tpu.memory_space<vmem>>, %arg15: memref<4x8x8xbf16, #tpu.memory_space<vmem>>, %arg16: memref<4x8x8xbf16, #tpu.memory_space<vmem>>) attributes {dimension_semantics = [#tpu.dimension_semantics<parallel>, #tpu.dimension_semantics<arbitrary>], iteration_bounds = array<i64: 2, 1>, scalar_prefetch = 0 : i64, scratch_operands = 2 : i64, tpu.core_type = #tpu.core_type<tc>, window_params = [{transform_indices = @transform_0, window_bounds = array<i64: 1, 8, 32>}, {transform_indices = @transform_1, window_bounds = array<i64: 1, 8, 32>}, {transform_indices = @transform_2, window_bounds = array<i64: 1, 8, 32>}, {pipeline_mode = #tpu.pipeline_mode<synchronous>, transform_indices = @transform_3, window_bounds = array<i64: 32, 32>}, {pipeline_mode = #tpu.pipeline_mode<synchronous>, transform_indices = @transform_4, window_bounds = array<i64: 1, 32>}, {pipeline_mode = #tpu.pipeline_mode<synchronous>, transform_indices = @transform_5, window_bounds = array<i64: 32, 32>}, {pipeline_mode = #tpu.pipeline_mode<synchronous>, transform_indices = @transform_6, window_bounds = array<i64: 1, 32>}, {pipeline_mode = #tpu.pipeline_mode<synchronous>, transform_indices = @transform_7, window_bounds = array<i64: 32, 32>}, {pipeline_mode = #tpu.pipeline_mode<synchronous>, transform_indices = @transform_8, window_bounds = array<i64: 1, 32>}, {pipeline_mode = #tpu.pipeline_mode<synchronous>, transform_indices = @transform_9, window_bounds = array<i64: 4, 8, 32>}, {pipeline_mode = #tpu.pipeline_mode<synchronous>, transform_indices = @transform_10, window_bounds = array<i64: 1, 32>}, {transform_indices = @transform_11, window_bounds = array<i64: 1, 8, 32>}, {transform_indices = @transform_12, window_bounds = array<i64: 1, 4, 8, 8>}]} {
    %c0_i32 = arith.constant 0 : i32
    %0 = arith.cmpi eq, %arg1, %c0_i32 : i32
    %1 = arith.extui %0 : i1 to i32
    %c0_i32_0 = arith.constant 0 : i32
    %2 = arith.cmpi ne, %1, %c0_i32_0 : i32
    scf.if %2 {
      %c0_31 = arith.constant 0 : index
      %c0_32 = arith.constant 0 : index
      %c0_33 = arith.constant 0 : index
      %57 = vector.load %arg3[%c0_31, %c0_32, %c0_33] : memref<1x8x32xbf16, #tpu.memory_space<vmem>>, vector<1x8x32xbf16>
      %58 = vector.shape_cast %57 : vector<1x8x32xbf16> to vector<8x32xbf16>
      %c0_34 = arith.constant 0 : index
      %c0_35 = arith.constant 0 : index
      %c0_36 = arith.constant 0 : index
      %59 = vector.load %arg4[%c0_34, %c0_35, %c0_36] : memref<1x8x32xbf16, #tpu.memory_space<vmem>>, vector<1x8x32xbf16>
      %60 = vector.shape_cast %59 : vector<1x8x32xbf16> to vector<8x32xbf16>
      %c0_37 = arith.constant 0 : index
      %c0_38 = arith.constant 0 : index
      %61 = vector.load %arg7[%c0_37, %c0_38] : memref<32x32xbf16, #tpu.memory_space<vmem>>, vector<32x32xbf16>
      %cst_39 = arith.constant dense<0.000000e+00> : vector<8x32xf32>
      %62 = tpu.matmul %58, %61, %cst_39 {dimension_numbers = #tpu.dot_dimension_numbers<[1], [0], [0], [1], [0, 0, 1, 1], [], []>} : vector<8x32xbf16>, vector<32x32xbf16>, vector<8x32xf32> -> vector<8x32xf32>
      %c0_40 = arith.constant 0 : index
      %c0_41 = arith.constant 0 : index
      %63 = vector.load %arg8[%c0_40, %c0_41] : memref<1x32xf32, #tpu.memory_space<vmem>>, vector<1x32xf32>
      %64 = vector.broadcast %63 : vector<1x32xf32> to vector<8x32xf32>
      %65 = arith.addf %62, %64 : vector<8x32xf32>
      %c0_42 = arith.constant 0 : index
      %c0_43 = arith.constant 0 : index
      %66 = vector.load %arg9[%c0_42, %c0_43] : memref<32x32xbf16, #tpu.memory_space<vmem>>, vector<32x32xbf16>
      %cst_44 = arith.constant dense<0.000000e+00> : vector<8x32xf32>
      %67 = tpu.matmul %60, %66, %cst_44 {dimension_numbers = #tpu.dot_dimension_numbers<[1], [0], [0], [1], [0, 0, 1, 1], [], []>} : vector<8x32xbf16>, vector<32x32xbf16>, vector<8x32xf32> -> vector<8x32xf32>
      %c0_45 = arith.constant 0 : index
      %c0_46 = arith.constant 0 : index
      %68 = vector.load %arg10[%c0_45, %c0_46] : memref<1x32xf32, #tpu.memory_space<vmem>>, vector<1x32xf32>
      %69 = vector.broadcast %68 : vector<1x32xf32> to vector<8x32xf32>
      %70 = arith.addf %67, %69 : vector<8x32xf32>
      %71 = vector.extract_strided_slice %65 {offsets = [0, 0], sizes = [8, 8], strides = [1, 1]} : vector<8x32xf32> to vector<8x8xf32>
      %72 = vector.extract_strided_slice %65 {offsets = [0, 8], sizes = [8, 8], strides = [1, 1]} : vector<8x32xf32> to vector<8x8xf32>
      %73 = vector.extract_strided_slice %65 {offsets = [0, 16], sizes = [8, 8], strides = [1, 1]} : vector<8x32xf32> to vector<8x8xf32>
      %74 = vector.extract_strided_slice %65 {offsets = [0, 24], sizes = [8, 8], strides = [1, 1]} : vector<8x32xf32> to vector<8x8xf32>
      %75 = tpu.concatenate %71, %72, %73, %74 in 0 : vector<8x8xf32>, vector<8x8xf32>, vector<8x8xf32>, vector<8x8xf32> -> vector<32x8xf32>
      %76 = vector.shape_cast %75 : vector<32x8xf32> to vector<4x8x8xf32>
      %77 = arith.truncf %76 : vector<4x8x8xf32> to vector<4x8x8xbf16>
      %c0_47 = arith.constant 0 : index
      %c0_48 = arith.constant 0 : index
      %c0_49 = arith.constant 0 : index
      %78 = vector.load %arg15[%c0_47, %c0_48, %c0_49] : memref<4x8x8xbf16, #tpu.memory_space<vmem>>, vector<4x8x8xbf16>
      tpu.vector_store %arg15[%c0_47, %c0_48, %c0_49], %77 {strides = array<i32>} : memref<4x8x8xbf16, #tpu.memory_space<vmem>>, vector<4x8x8xbf16>,
      %79 = vector.extract_strided_slice %70 {offsets = [0, 0], sizes = [8, 8], strides = [1, 1]} : vector<8x32xf32> to vector<8x8xf32>
      %80 = vector.extract_strided_slice %70 {offsets = [0, 8], sizes = [8, 8], strides = [1, 1]} : vector<8x32xf32> to vector<8x8xf32>
      %81 = vector.extract_strided_slice %70 {offsets = [0, 16], sizes = [8, 8], strides = [1, 1]} : vector<8x32xf32> to vector<8x8xf32>
      %82 = vector.extract_strided_slice %70 {offsets = [0, 24], sizes = [8, 8], strides = [1, 1]} : vector<8x32xf32> to vector<8x8xf32>
      %83 = tpu.concatenate %79, %80, %81, %82 in 0 : vector<8x8xf32>, vector<8x8xf32>, vector<8x8xf32>, vector<8x8xf32> -> vector<32x8xf32>
      %84 = vector.shape_cast %83 : vector<32x8xf32> to vector<4x8x8xf32>
      %85 = arith.truncf %84 : vector<4x8x8xf32> to vector<4x8x8xbf16>
      %c0_50 = arith.constant 0 : index
      %c0_51 = arith.constant 0 : index
      %c0_52 = arith.constant 0 : index
      %86 = vector.load %arg16[%c0_50, %c0_51, %c0_52] : memref<4x8x8xbf16, #tpu.memory_space<vmem>>, vector<4x8x8xbf16>
      tpu.vector_store %arg16[%c0_50, %c0_51, %c0_52], %85 {strides = array<i32>} : memref<4x8x8xbf16, #tpu.memory_space<vmem>>, vector<4x8x8xbf16>,
    } else {
    }
    %c0 = arith.constant 0 : index
    %c0_1 = arith.constant 0 : index
    %c0_2 = arith.constant 0 : index
    %3 = vector.load %arg2[%c0, %c0_1, %c0_2] : memref<1x8x32xbf16, #tpu.memory_space<vmem>>, vector<1x8x32xbf16>
    %4 = vector.shape_cast %3 : vector<1x8x32xbf16> to vector<8x32xbf16>
    %c0_3 = arith.constant 0 : index
    %c0_4 = arith.constant 0 : index
    %5 = vector.load %arg5[%c0_3, %c0_4] : memref<32x32xbf16, #tpu.memory_space<vmem>>, vector<32x32xbf16>
    %cst = arith.constant dense<0.000000e+00> : vector<8x32xf32>
    %6 = tpu.matmul %4, %5, %cst {dimension_numbers = #tpu.dot_dimension_numbers<[1], [0], [0], [1], [0, 0, 1, 1], [], []>} : vector<8x32xbf16>, vector<32x32xbf16>, vector<8x32xf32> -> vector<8x32xf32>
    %c0_5 = arith.constant 0 : index
    %c0_6 = arith.constant 0 : index
    %7 = vector.load %arg6[%c0_5, %c0_6] : memref<1x32xf32, #tpu.memory_space<vmem>>, vector<1x32xf32>
    %8 = vector.broadcast %7 : vector<1x32xf32> to vector<8x32xf32>
    %9 = arith.addf %6, %8 : vector<8x32xf32>
    %10 = vector.extract_strided_slice %9 {offsets = [0, 0], sizes = [8, 8], strides = [1, 1]} : vector<8x32xf32> to vector<8x8xf32>
    %11 = vector.extract_strided_slice %9 {offsets = [0, 8], sizes = [8, 8], strides = [1, 1]} : vector<8x32xf32> to vector<8x8xf32>
    %12 = vector.extract_strided_slice %9 {offsets = [0, 16], sizes = [8, 8], strides = [1, 1]} : vector<8x32xf32> to vector<8x8xf32>
    %13 = vector.extract_strided_slice %9 {offsets = [0, 24], sizes = [8, 8], strides = [1, 1]} : vector<8x32xf32> to vector<8x8xf32>
    %14 = tpu.concatenate %10, %11, %12, %13 in 0 : vector<8x8xf32>, vector<8x8xf32>, vector<8x8xf32>, vector<8x8xf32> -> vector<32x8xf32>
    %15 = vector.shape_cast %14 : vector<32x8xf32> to vector<4x8x8xf32>
    %cst_7 = arith.constant 0.353553385 : f32
    %16 = vector.broadcast %cst_7 : f32 to vector<4x8x8xf32>
    %17 = arith.mulf %15, %16 : vector<4x8x8xf32>
    %18 = arith.truncf %17 : vector<4x8x8xf32> to vector<4x8x8xbf16>
    %c0_8 = arith.constant 0 : index
    %c0_9 = arith.constant 0 : index
    %c0_10 = arith.constant 0 : index
    %19 = vector.load %arg15[%c0_8, %c0_9, %c0_10] : memref<4x8x8xbf16, #tpu.memory_space<vmem>>, vector<4x8x8xbf16>
    "tpu.trace_start"() <{level = 10 : i32, message = "hqd,hkd->hqk"}> : () -> ()
    %cst_11 = arith.constant dense<0.000000e+00> : vector<4x8x8xf32>
    %20 = tpu.matmul %18, %19, %cst_11 {dimension_numbers = #tpu.dot_dimension_numbers<[2], [2], [1], [1], [0, 0, 0, 1, 1, 1], [0], [0]>} : vector<4x8x8xbf16>, vector<4x8x8xbf16>, vector<4x8x8xf32> -> vector<4x8x8xf32>
    "tpu.trace_stop"() : () -> ()
    %cst_12 = arith.constant dense<0xFF800000> : vector<4x8xf32>
    %21 = vector.multi_reduction <maximumf>, %20, %cst_12 [2] : vector<4x8x8xf32> to vector<4x8xf32>
    %22 = vector.shape_cast %21 : vector<4x8xf32> to vector<4x8x1xf32>
    %23 = vector.broadcast %22 : vector<4x8x1xf32> to vector<4x8x8xf32>
    %24 = arith.subf %20, %23 : vector<4x8x8xf32>
    %25 = math.exp %24 : vector<4x8x8xf32>
    %cst_13 = arith.constant dense<0.000000e+00> : vector<4x8xf32>
    %26 = vector.multi_reduction <add>, %25, %cst_13 [2] : vector<4x8x8xf32> to vector<4x8xf32>
    %27 = vector.shape_cast %26 : vector<4x8xf32> to vector<4x8x1xf32>
    %28 = tpu.reciprocal %27 {approx = true} : vector<4x8x1xf32> -> vector<4x8x1xf32>
    %29 = vector.broadcast %28 : vector<4x8x1xf32> to vector<4x8x8xf32>
    %30 = arith.mulf %25, %29 : vector<4x8x8xf32>
    %c0_14 = arith.constant 0 : index
    %c0_15 = arith.constant 0 : index
    %c0_16 = arith.constant 0 : index
    %c0_17 = arith.constant 0 : index
    %31 = vector.load %arg14[%c0_14, %c0_15, %c0_16, %c0_17] : memref<1x4x8x8xf32, #tpu.memory_space<vmem>>, vector<1x4x8x8xf32>
    %32 = vector.shape_cast %31 : vector<1x4x8x8xf32> to vector<4x8x8xf32>
    %33 = vector.shape_cast %30 : vector<4x8x8xf32> to vector<1x4x8x8xf32>
    tpu.vector_store %arg14[%c0_14, %c0_15, %c0_16, %c0_17], %33 {strides = array<i32>} : memref<1x4x8x8xf32, #tpu.memory_space<vmem>>, vector<1x4x8x8xf32>,
    %34 = arith.truncf %30 : vector<4x8x8xf32> to vector<4x8x8xbf16>
    %c0_18 = arith.constant 0 : index
    %c0_19 = arith.constant 0 : index
    %c0_20 = arith.constant 0 : index
    %35 = vector.load %arg16[%c0_18, %c0_19, %c0_20] : memref<4x8x8xbf16, #tpu.memory_space<vmem>>, vector<4x8x8xbf16>
    "tpu.trace_start"() <{level = 10 : i32, message = "hqk,hkd->hqd"}> : () -> ()
    %cst_21 = arith.constant dense<0.000000e+00> : vector<4x8x8xf32>
    %36 = tpu.matmul %34, %35, %cst_21 {dimension_numbers = #tpu.dot_dimension_numbers<[2], [1], [1], [2], [0, 0, 0, 1, 1, 2], [0], [0]>} : vector<4x8x8xbf16>, vector<4x8x8xbf16>, vector<4x8x8xf32> -> vector<4x8x8xf32>
    "tpu.trace_stop"() : () -> ()
    %37 = arith.truncf %36 : vector<4x8x8xf32> to vector<4x8x8xbf16>
    %c0_22 = arith.constant 0 : index
    %c0_23 = arith.constant 0 : index
    %c0_24 = arith.constant 0 : index
    %38 = vector.load %arg11[%c0_22, %c0_23, %c0_24] : memref<4x8x32xbf16, #tpu.memory_space<vmem>>, vector<4x8x32xbf16>
    "tpu.trace_start"() <{level = 10 : i32, message = "hqd,hdm->hqm"}> : () -> ()
    %cst_25 = arith.constant dense<0.000000e+00> : vector<4x8x32xf32>
    %39 = tpu.matmul %37, %38, %cst_25 {dimension_numbers = #tpu.dot_dimension_numbers<[2], [1], [1], [2], [0, 0, 0, 1, 1, 2], [0], [0]>} : vector<4x8x8xbf16>, vector<4x8x32xbf16>, vector<4x8x32xf32> -> vector<4x8x32xf32>
    "tpu.trace_stop"() : () -> ()
    %40 = vector.extract_strided_slice %39 {offsets = [0, 0, 0], sizes = [1, 8, 32], strides = [1, 1, 1]} : vector<4x8x32xf32> to vector<1x8x32xf32>
    %41 = vector.shape_cast %40 : vector<1x8x32xf32> to vector<8x32xf32>
    %42 = vector.extract_strided_slice %39 {offsets = [1, 0, 0], sizes = [1, 8, 32], strides = [1, 1, 1]} : vector<4x8x32xf32> to vector<1x8x32xf32>
    %43 = vector.shape_cast %42 : vector<1x8x32xf32> to vector<8x32xf32>
    %44 = arith.addf %41, %43 : vector<8x32xf32>
    %45 = vector.extract_strided_slice %39 {offsets = [2, 0, 0], sizes = [1, 8, 32], strides = [1, 1, 1]} : vector<4x8x32xf32> to vector<1x8x32xf32>
    %46 = vector.shape_cast %45 : vector<1x8x32xf32> to vector<8x32xf32>
    %47 = arith.addf %44, %46 : vector<8x32xf32>
    %48 = vector.extract_strided_slice %39 {offsets = [3, 0, 0], sizes = [1, 8, 32], strides = [1, 1, 1]} : vector<4x8x32xf32> to vector<1x8x32xf32>
    %49 = vector.shape_cast %48 : vector<1x8x32xf32> to vector<8x32xf32>
    %50 = arith.addf %47, %49 : vector<8x32xf32>
    %c0_26 = arith.constant 0 : index
    %c0_27 = arith.constant 0 : index
    %51 = vector.load %arg12[%c0_26, %c0_27] : memref<1x32xf32, #tpu.memory_space<vmem>>, vector<1x32xf32>
    %52 = vector.broadcast %51 : vector<1x32xf32> to vector<8x32xf32>
    %53 = arith.addf %50, %52 : vector<8x32xf32>
    %c0_28 = arith.constant 0 : index
    %c0_29 = arith.constant 0 : index
    %c0_30 = arith.constant 0 : index
    %54 = vector.load %arg13[%c0_28, %c0_29, %c0_30] : memref<1x8x32xf32, #tpu.memory_space<vmem>>, vector<1x8x32xf32>
    %55 = vector.shape_cast %54 : vector<1x8x32xf32> to vector<8x32xf32>
    %56 = vector.shape_cast %53 : vector<8x32xf32> to vector<1x8x32xf32>
    tpu.vector_store %arg13[%c0_28, %c0_29, %c0_30], %56 {strides = array<i32>} : memref<1x8x32xf32, #tpu.memory_space<vmem>>, vector<1x8x32xf32>,
    return
  }
  func.func @transform_0(%arg0: i32, %arg1: i32) -> (i32, i32, i32) {
    %c0_i32 = arith.constant 0 : i32
    %c0_i32_0 = arith.constant 0 : i32
    return %arg0, %arg1, %c0_i32 : i32, i32, i32
  }
  func.func @transform_1(%arg0: i32, %arg1: i32) -> (i32, i32, i32) {
    %c0_i32 = arith.constant 0 : i32
    %c0_i32_0 = arith.constant 0 : i32
    %c0_i32_1 = arith.constant 0 : i32
    return %arg0, %c0_i32, %c0_i32_0 : i32, i32, i32
  }
  func.func @transform_2(%arg0: i32, %arg1: i32) -> (i32, i32, i32) {
    %c0_i32 = arith.constant 0 : i32
    %c0_i32_0 = arith.constant 0 : i32
    %c0_i32_1 = arith.constant 0 : i32
    return %arg0, %c0_i32, %c0_i32_0 : i32, i32, i32
  }
  func.func @transform_3(%arg0: i32, %arg1: i32) -> (i32, i32) {
    %c0_i32 = arith.constant 0 : i32
    %c0_i32_0 = arith.constant 0 : i32
    %c0_i32_1 = arith.constant 0 : i32
    return %c0_i32, %c0_i32_0 : i32, i32
  }
  func.func @transform_4(%arg0: i32, %arg1: i32) -> (i32, i32) {
    %c0_i32 = arith.constant 0 : i32
    %c0_i32_0 = arith.constant 0 : i32
    %c0_i32_1 = arith.constant 0 : i32
    return %c0_i32, %c0_i32_0 : i32, i32
  }
  func.func @transform_5(%arg0: i32, %arg1: i32) -> (i32, i32) {
    %c0_i32 = arith.constant 0 : i32
    %c0_i32_0 = arith.constant 0 : i32
    %c0_i32_1 = arith.constant 0 : i32
    return %c0_i32, %c0_i32_0 : i32, i32
  }
  func.func @transform_6(%arg0: i32, %arg1: i32) -> (i32, i32) {
    %c0_i32 = arith.constant 0 : i32
    %c0_i32_0 = arith.constant 0 : i32
    %c0_i32_1 = arith.constant 0 : i32
    return %c0_i32, %c0_i32_0 : i32, i32
  }
  func.func @transform_7(%arg0: i32, %arg1: i32) -> (i32, i32) {
    %c0_i32 = arith.constant 0 : i32
    %c0_i32_0 = arith.constant 0 : i32
    %c0_i32_1 = arith.constant 0 : i32
    return %c0_i32, %c0_i32_0 : i32, i32
  }
  func.func @transform_8(%arg0: i32, %arg1: i32) -> (i32, i32) {
    %c0_i32 = arith.constant 0 : i32
    %c0_i32_0 = arith.constant 0 : i32
    %c0_i32_1 = arith.constant 0 : i32
    return %c0_i32, %c0_i32_0 : i32, i32
  }
  func.func @transform_9(%arg0: i32, %arg1: i32) -> (i32, i32, i32) {
    %c0_i32 = arith.constant 0 : i32
    %c0_i32_0 = arith.constant 0 : i32
    %c0_i32_1 = arith.constant 0 : i32
    %c0_i32_2 = arith.constant 0 : i32
    return %c0_i32, %c0_i32_0, %c0_i32_1 : i32, i32, i32
  }
  func.func @transform_10(%arg0: i32, %arg1: i32) -> (i32, i32) {
    %c0_i32 = arith.constant 0 : i32
    %c0_i32_0 = arith.constant 0 : i32
    %c0_i32_1 = arith.constant 0 : i32
    return %c0_i32, %c0_i32_0 : i32, i32
  }
  func.func @transform_11(%arg0: i32, %arg1: i32) -> (i32, i32, i32) {
    %c0_i32 = arith.constant 0 : i32
    %c0_i32_0 = arith.constant 0 : i32
    return %arg0, %arg1, %c0_i32 : i32, i32, i32
  }
  func.func @transform_12(%arg0: i32, %arg1: i32) -> (i32, i32, i32, i32) {
    %c0_i32 = arith.constant 0 : i32
    %c0_i32_0 = arith.constant 0 : i32
    %c0_i32_1 = arith.constant 0 : i32
    return %arg0, %c0_i32, %arg1, %c0_i32_0 : i32, i32, i32, i32
  }
}

</mosaic_0001>

<llo_original>
// kernel: tpu_custom_call.1
$region0: #{tpu_custom_call.1}
  #allocation0 [shape = 'u32[]', space=smem, size = 0x4, offset = 0x4, fixed_abs, tag = 'smem constant byte address 0x4 - core index']
  #allocation1 [shape = 'u32[144,128]{1,0:T(1,128)}', space=vmem, size = 0x12000, scoped, tag = 'internal scratch']
  #allocation2 [shape = 'bf16[4,8,8]{2,1,0:T(8,128)(2,1)}', space=vmem, size = 0x2000, scoped, tag = 'scratch operand']
  #allocation3 [shape = 'bf16[4,8,8]{2,1,0:T(8,128)(2,1)}', space=vmem, size = 0x2000, scoped, tag = 'scratch operand']
  %s0 = inlined_call_operand.hbm [shape: bf16[2,8,32], index: 0, kind: input, shape index: {}]
  %s1 = inlined_call_operand.hbm [shape: bf16[2,8,32], index: 1, kind: input, shape index: {}]
  %s2 = inlined_call_operand.hbm [shape: bf16[2,8,32], index: 2, kind: input, shape index: {}]
  %s3 = inlined_call_operand.hbm [shape: bf16[32,32], index: 3, kind: input, shape index: {}]
  %s4 = inlined_call_operand.vmem [shape: f32[1,32], index: 4, kind: input, shape index: {}]
  %s5 = inlined_call_operand.vmem [shape: bf16[32,32], index: 5, kind: input, shape index: {}]
  %s6 = inlined_call_operand.vmem [shape: f32[1,32], index: 6, kind: input, shape index: {}]
  %s7 = inlined_call_operand.hbm [shape: bf16[32,32], index: 7, kind: input, shape index: {}]
  %s8 = inlined_call_operand.hbm [shape: f32[1,32], index: 8, kind: input, shape index: {}]
  %s9 = inlined_call_operand.vmem [shape: bf16[4,8,32], index: 9, kind: input, shape index: {}]
  %s10 = inlined_call_operand.vmem [shape: f32[1,32], index: 10, kind: input, shape index: {}]
  %s11 = inlined_call_operand.hbm [shape: f32[2,8,32], index: 11, kind: output, shape index: {0}]
  %s12 = inlined_call_operand.hbm [shape: f32[2,4,8,8], index: 12, kind: output, shape index: {1}]
  %13 = xla_tuple %s11, %s12
  %s14 = sld [smem:[#allocation0]]
  $region113: #{tpu_custom_call.1} parent=0
    _
  %s16 = ssub.s32 1, %s14
  %s17 = scalar_select 0, %s16, %s14
  $region1: #{tpu_custom_call.1} parent=0
    #allocation4 [shape = 'u8[4096]{0}', space=vmem, size = 0x1000, scoped, tag = 'input window, operand 0']
    #allocation5 [shape = 's32[2]{0}', space=sflag, size = 0x8, scoped, tag = 'scoped memory for tpu_custom_call.1']
    #allocation6 [shape = 's32[2]{0}', space=sflag, size = 0x8, scoped, tag = 'scoped memory for tpu_custom_call.1']
    #allocation7 [shape = 'u8[4096]{0}', space=vmem, size = 0x1000, scoped, tag = 'input window, operand 1']
    #allocation8 [shape = 's32[2]{0}', space=sflag, size = 0x8, scoped, tag = 'scoped memory for tpu_custom_call.1']
    #allocation9 [shape = 'u8[4096]{0}', space=vmem, size = 0x1000, scoped, tag = 'input window, operand 2']
    #allocation10 [shape = 'u8[8192]{0}', space=vmem, size = 0x2000, scoped, tag = 'input window, operand 3, single buffered']
    #allocation11 [shape = 's32[1]{0}', space=sflag, size = 0x4, scoped, tag = 'scoped memory for tpu_custom_call.1']
    #allocation12 [shape = 'u8[8192]{0}', space=vmem, size = 0x2000, scoped, tag = 'input window, operand 7, single buffered']
    #allocation13 [shape = 'u8[512]{0}', space=vmem, size = 0x400, scoped, tag = 'input window, operand 8, single buffered']
    #allocation14 [shape = 's32[1]{0}', space=sflag, size = 0x4, scoped, tag = 'scoped memory for tpu_custom_call.1']
    #allocation15 [shape = 'u8[8192]{0}', space=vmem, size = 0x2000, scoped, tag = 'output window, operand 0']
    #allocation16 [shape = 'u8[32768]{0}', space=vmem, size = 0x8000, scoped, tag = 'output window, operand 1']
    #allocation17 [shape = 's32[2]{0}', space=sflag, size = 0x8, scoped, tag = 'scoped memory for tpu_custom_call.1']
    %18 = vsyncpa [#allocation5], 0
    %s19 = scalar_lea.sflag [#allocation5], 1
    %20 = vsyncpa %s19, 0
    %21 = vsyncpa [#allocation8], 0
    %s22 = scalar_lea.sflag [#allocation8], 1
    %23 = vsyncpa %s22, 0
    %24 = vsyncpa [#allocation11], 0
    %25 = vsyncpa [#allocation14], 0
    %26 = vsyncpa [#allocation6], 0
    %s27 = scalar_lea.sflag [#allocation6], 1
    %28 = vsyncpa %s27, 0
    %29 = vsyncpa [#allocation17], 0
    %s30 = scalar_lea.sflag [#allocation17], 1
    %31 = vsyncpa %s30, 0
    loop: start=0, step=1, limit=4
    $region2: #{tpu_custom_call.1} parent=1 // loop_pre_header
      _
    $region3: #{tpu_custom_call.1} parent=1 // loop_header
      %s33 = sphi 0, %s37
      %p34 = scmp.ge.s32.totalorder %s33, 4
      %s40 = sphi 0, %s52
      %s41 = sphi 0, %s48
      %s42 = sphi 0, %s40
      %s43 = sphi 0, %s41
      %s44 = sphi 0, %s42
      %s45 = sphi 0, %s43
      %s57 = sphi 0, %s59
      %s60 = sphi 0, %s57
      %s61 = sphi 0, %s60
      %s77 = sphi 0, %s61
      %s83 = sphi 0, %s85
      %s86 = sphi 0, %s83
      %s87 = sphi 0, %s86
      %s103 = sphi 0, %s87
      %s109 = sphi 0, %s111
      %s112 = sphi 0, %s109
      %s113 = sphi 0, %s112
      %s129 = sphi 0, %s113
      %s133 = sphi 0, %s133
      %s135 = sphi 0, %s133
      %s136 = sphi 0, %s135
      %s150 = sphi 0, %s136
      %s154 = sphi 0, %s154
      %s156 = sphi 0, %s154
      %s157 = sphi 0, %s156
      %s171 = sphi 0, %s157
      %s175 = sphi 0, %s175
      %s177 = sphi 0, %s175
      %s178 = sphi 0, %s177
      %s192 = sphi 0, %s178
      %s196 = sphi 0, %s196
      %s198 = sphi 0, %s196
      %s199 = sphi 0, %s198
      %s213 = sphi 0, %s199
      %s217 = sphi 0, %s217
      %s219 = sphi 0, %s217
      %s220 = sphi 0, %s219
      %s234 = sphi 0, %s220
      %s238 = sphi 0, %s238
      %s240 = sphi 0, %s238
      %s241 = sphi 0, %s240
      %s255 = sphi 0, %s241
      %s259 = sphi 0, %s259
      %s261 = sphi 0, %s259
      %s262 = sphi 0, %s261
      %s276 = sphi 0, %s262
      %s280 = sphi 0, %s280
      %s282 = sphi 0, %s280
      %s283 = sphi 0, %s282
      %s297 = sphi 0, %s283
      %s305 = sphi 0, %s307
      %s308 = sphi 0, %s305
      %s309 = sphi 0, %s308
      %s325 = sphi 0, %s309
      %s333 = sphi 0, %s335
      %s336 = sphi 0, %s333
      %s337 = sphi 0, %s336
      %s353 = sphi 0, %s337
    $region4: #{tpu_custom_call.1} parent=1 // loop_header_branch
      %36 = sbr.rel (%p34) target = $region8
    $region5: #{tpu_custom_call.1} parent=1 // loop_body
      %s38 = ssub.s32 %s33, 1
      %s39 = ssub.s32 %s33, 2
      %s46 = sadd.s32 1, %s41
      %p47 = scmp.ge.s32.totalorder %s46, 1
      %s48 = scalar_select %p47, 0, %s46
      %s49 = sadd.s32 1, %s40
      %s50 = scalar_select %p47, %s49, %s40
      %p51 = scmp.ge.s32.totalorder %s50, 2
      %s52 = scalar_select %p51, 0, %s50
      %s53 = ssub.s32 %s40, %s52
      %s54 = ssub.s32 %s41, %s48
      %s55 = sor.u32 %s53, %s54
      %p56 = scmp.eq.s32.totalorder %s55, 0
      %s58 = sadd.s32 %s57, 1
      %s59 = scalar_select %p56, %s57, %s58
      %p62 = pneg %p56
      %p63 = scmp.eq.s32.totalorder %s33, 1
      %p64 = por %p62, %p63
      %p65 = scmp.ne.s32.totalorder %s57, %s60
      %p66 = scmp.eq.s32.totalorder %s33, 0
      %p67 = por %p65, %p66
      %p68 = scmp.ne.s32.totalorder %s57, %s60
      %p69 = scmp.eq.s32.totalorder %s38, 1
      %p70 = por %p68, %p69
      %p71 = scmp.ne.s32.totalorder %s60, %s61
      %p72 = scmp.eq.s32.totalorder %s38, 0
      %p73 = por %p71, %p72
      %p74 = scmp.ne.s32.totalorder %s60, %s61
      %p75 = scmp.eq.s32.totalorder %s39, 1
      %p76 = por %p74, %p75
      %p78 = scmp.ne.s32.totalorder %s61, %s77
      %p79 = scmp.eq.s32.totalorder %s39, 0
      %p80 = por %p78, %p79
      %s81 = ssub.s32 %s40, %s52
      %p82 = scmp.eq.s32.totalorder %s81, 0
      %s84 = sadd.s32 %s83, 1
      %s85 = scalar_select %p82, %s83, %s84
      %p88 = pneg %p82
      %p89 = scmp.eq.s32.totalorder %s33, 1
      %p90 = por %p88, %p89
      %p91 = scmp.ne.s32.totalorder %s83, %s86
      %p92 = scmp.eq.s32.totalorder %s33, 0
      %p93 = por %p91, %p92
      %p94 = scmp.ne.s32.totalorder %s83, %s86
      %p95 = scmp.eq.s32.totalorder %s38, 1
      %p96 = por %p94, %p95
      %p97 = scmp.ne.s32.totalorder %s86, %s87
      %p98 = scmp.eq.s32.totalorder %s38, 0
      %p99 = por %p97, %p98
      %p100 = scmp.ne.s32.totalorder %s86, %s87
      %p101 = scmp.eq.s32.totalorder %s39, 1
      %p102 = por %p100, %p101
      %p104 = scmp.ne.s32.totalorder %s87, %s103
      %p105 = scmp.eq.s32.totalorder %s39, 0
      %p106 = por %p104, %p105
      %s107 = ssub.s32 %s40, %s52
      %p108 = scmp.eq.s32.totalorder %s107, 0
      %s110 = sadd.s32 %s109, 1
      %s111 = scalar_select %p108, %s109, %s110
      %p114 = pneg %p108
      %p115 = scmp.eq.s32.totalorder %s33, 1
      %p116 = por %p114, %p115
      %p117 = scmp.ne.s32.totalorder %s109, %s112
      %p118 = scmp.eq.s32.totalorder %s33, 0
      %p119 = por %p117, %p118
      %p120 = scmp.ne.s32.totalorder %s109, %s112
      %p121 = scmp.eq.s32.totalorder %s38, 1
      %p122 = por %p120, %p121
      %p123 = scmp.ne.s32.totalorder %s112, %s113
      %p124 = scmp.eq.s32.totalorder %s38, 0
      %p125 = por %p123, %p124
      %p126 = scmp.ne.s32.totalorder %s112, %s113
      %p127 = scmp.eq.s32.totalorder %s39, 1
      %p128 = por %p126, %p127
      %p130 = scmp.ne.s32.totalorder %s113, %s129
      %p131 = scmp.eq.s32.totalorder %s39, 0
      %p132 = por %p130, %p131
      %s134 = sadd.s32 %s133, 1
      %p137 = scmp.eq.s32.totalorder %s33, 1
      %p138 = scmp.ne.s32.totalorder %s133, %s135
      %p139 = scmp.eq.s32.totalorder %s33, 0
      %p140 = por %p138, %p139
      %p141 = scmp.ne.s32.totalorder %s133, %s135
      %p142 = scmp.eq.s32.totalorder %s38, 1
      %p143 = por %p141, %p142
      %p144 = scmp.ne.s32.totalorder %s135, %s136
      %p145 = scmp.eq.s32.totalorder %s38, 0
      %p146 = por %p144, %p145
      %p147 = scmp.ne.s32.totalorder %s135, %s136
      %p148 = scmp.eq.s32.totalorder %s39, 1
      %p149 = por %p147, %p148
      %p151 = scmp.ne.s32.totalorder %s136, %s150
      %p152 = scmp.eq.s32.totalorder %s39, 0
      %p153 = por %p151, %p152
      %s155 = sadd.s32 %s154, 1
      %p158 = scmp.eq.s32.totalorder %s33, 1
      %p159 = scmp.ne.s32.totalorder %s154, %s156
      %p160 = scmp.eq.s32.totalorder %s33, 0
      %p161 = por %p159, %p160
      %p162 = scmp.ne.s32.totalorder %s154, %s156
      %p163 = scmp.eq.s32.totalorder %s38, 1
      %p164 = por %p162, %p163
      %p165 = scmp.ne.s32.totalorder %s156, %s157
      %p166 = scmp.eq.s32.totalorder %s38, 0
      %p167 = por %p165, %p166
      %p168 = scmp.ne.s32.totalorder %s156, %s157
      %p169 = scmp.eq.s32.totalorder %s39, 1
      %p170 = por %p168, %p169
      %p172 = scmp.ne.s32.totalorder %s157, %s171
      %p173 = scmp.eq.s32.totalorder %s39, 0
      %p174 = por %p172, %p173
      %s176 = sadd.s32 %s175, 1
      %p179 = scmp.eq.s32.totalorder %s33, 1
      %p180 = scmp.ne.s32.totalorder %s175, %s177
      %p181 = scmp.eq.s32.totalorder %s33, 0
      %p182 = por %p180, %p181
      %p183 = scmp.ne.s32.totalorder %s175, %s177
      %p184 = scmp.eq.s32.totalorder %s38, 1
      %p185 = por %p183, %p184
      %p186 = scmp.ne.s32.totalorder %s177, %s178
      %p187 = scmp.eq.s32.totalorder %s38, 0
      %p188 = por %p186, %p187
      %p189 = scmp.ne.s32.totalorder %s177, %s178
      %p190 = scmp.eq.s32.totalorder %s39, 1
      %p191 = por %p189, %p190
      %p193 = scmp.ne.s32.totalorder %s178, %s192
      %p194 = scmp.eq.s32.totalorder %s39, 0
      %p195 = por %p193, %p194
      %s197 = sadd.s32 %s196, 1
      %p200 = scmp.eq.s32.totalorder %s33, 1
      %p201 = scmp.ne.s32.totalorder %s196, %s198
      %p202 = scmp.eq.s32.totalorder %s33, 0
      %p203 = por %p201, %p202
      %p204 = scmp.ne.s32.totalorder %s196, %s198
      %p205 = scmp.eq.s32.totalorder %s38, 1
      %p206 = por %p204, %p205
      %p207 = scmp.ne.s32.totalorder %s198, %s199
      %p208 = scmp.eq.s32.totalorder %s38, 0
      %p209 = por %p207, %p208
      %p210 = scmp.ne.s32.totalorder %s198, %s199
      %p211 = scmp.eq.s32.totalorder %s39, 1
      %p212 = por %p210, %p211
      %p214 = scmp.ne.s32.totalorder %s199, %s213
      %p215 = scmp.eq.s32.totalorder %s39, 0
      %p216 = por %p214, %p215
      %s218 = sadd.s32 %s217, 1
      %p221 = scmp.eq.s32.totalorder %s33, 1
      %p222 = scmp.ne.s32.totalorder %s217, %s219
      %p223 = scmp.eq.s32.totalorder %s33, 0
      %p224 = por %p222, %p223
      %p225 = scmp.ne.s32.totalorder %s217, %s219
      %p226 = scmp.eq.s32.totalorder %s38, 1
      %p227 = por %p225, %p226
      %p228 = scmp.ne.s32.totalorder %s219, %s220
      %p229 = scmp.eq.s32.totalorder %s38, 0
      %p230 = por %p228, %p229
      %p231 = scmp.ne.s32.totalorder %s219, %s220
      %p232 = scmp.eq.s32.totalorder %s39, 1
      %p233 = por %p231, %p232
      %p235 = scmp.ne.s32.totalorder %s220, %s234
      %p236 = scmp.eq.s32.totalorder %s39, 0
      %p237 = por %p235, %p236
      %s239 = sadd.s32 %s238, 1
      %p242 = scmp.eq.s32.totalorder %s33, 1
      %p243 = scmp.ne.s32.totalorder %s238, %s240
      %p244 = scmp.eq.s32.totalorder %s33, 0
      %p245 = por %p243, %p244
      %p246 = scmp.ne.s32.totalorder %s238, %s240
      %p247 = scmp.eq.s32.totalorder %s38, 1
      %p248 = por %p246, %p247
      %p249 = scmp.ne.s32.totalorder %s240, %s241
      %p250 = scmp.eq.s32.totalorder %s38, 0
      %p251 = por %p249, %p250
      %p252 = scmp.ne.s32.totalorder %s240, %s241
      %p253 = scmp.eq.s32.totalorder %s39, 1
      %p254 = por %p252, %p253
      %p256 = scmp.ne.s32.totalorder %s241, %s255
      %p257 = scmp.eq.s32.totalorder %s39, 0
      %p258 = por %p256, %p257
      %s260 = sadd.s32 %s259, 1
      %p263 = scmp.eq.s32.totalorder %s33, 1
      %p264 = scmp.ne.s32.totalorder %s259, %s261
      %p265 = scmp.eq.s32.totalorder %s33, 0
      %p266 = por %p264, %p265
      %p267 = scmp.ne.s32.totalorder %s259, %s261
      %p268 = scmp.eq.s32.totalorder %s38, 1
      %p269 = por %p267, %p268
      %p270 = scmp.ne.s32.totalorder %s261, %s262
      %p271 = scmp.eq.s32.totalorder %s38, 0
      %p272 = por %p270, %p271
      %p273 = scmp.ne.s32.totalorder %s261, %s262
      %p274 = scmp.eq.s32.totalorder %s39, 1
      %p275 = por %p273, %p274
      %p277 = scmp.ne.s32.totalorder %s262, %s276
      %p278 = scmp.eq.s32.totalorder %s39, 0
      %p279 = por %p277, %p278
      %s281 = sadd.s32 %s280, 1
      %p284 = scmp.eq.s32.totalorder %s33, 1
      %p285 = scmp.ne.s32.totalorder %s280, %s282
      %p286 = scmp.eq.s32.totalorder %s33, 0
      %p287 = por %p285, %p286
      %p288 = scmp.ne.s32.totalorder %s280, %s282
      %p289 = scmp.eq.s32.totalorder %s38, 1
      %p290 = por %p288, %p289
      %p291 = scmp.ne.s32.totalorder %s282, %s283
      %p292 = scmp.eq.s32.totalorder %s38, 0
      %p293 = por %p291, %p292
      %p294 = scmp.ne.s32.totalorder %s282, %s283
      %p295 = scmp.eq.s32.totalorder %s39, 1
      %p296 = por %p294, %p295
      %p298 = scmp.ne.s32.totalorder %s283, %s297
      %p299 = scmp.eq.s32.totalorder %s39, 0
      %p300 = por %p298, %p299
      %s301 = ssub.s32 %s40, %s52
      %s302 = ssub.s32 %s41, %s48
      %s303 = sor.u32 %s301, %s302
      %p304 = scmp.eq.s32.totalorder %s303, 0
      %s306 = sadd.s32 %s305, 1
      %s307 = scalar_select %p304, %s305, %s306
      %p310 = pneg %p304
      %p311 = scmp.eq.s32.totalorder %s33, 1
      %p312 = por %p310, %p311
      %p313 = scmp.ne.s32.totalorder %s305, %s308
      %p314 = scmp.eq.s32.totalorder %s33, 0
      %p315 = por %p313, %p314
      %p316 = scmp.ne.s32.totalorder %s305, %s308
      %p317 = scmp.eq.s32.totalorder %s38, 1
      %p318 = por %p316, %p317
      %p319 = scmp.ne.s32.totalorder %s308, %s309
      %p320 = scmp.eq.s32.totalorder %s38, 0
      %p321 = por %p319, %p320
      %p322 = scmp.ne.s32.totalorder %s308, %s309
      %p323 = scmp.eq.s32.totalorder %s39, 1
      %p324 = por %p322, %p323
      %p326 = scmp.ne.s32.totalorder %s309, %s325
      %p327 = scmp.eq.s32.totalorder %s39, 0
      %p328 = por %p326, %p327
      %s329 = ssub.s32 %s40, %s52
      %s330 = ssub.s32 %s41, %s48
      %s331 = sor.u32 %s329, %s330
      %p332 = scmp.eq.s32.totalorder %s331, 0
      %s334 = sadd.s32 %s333, 1
      %s335 = scalar_select %p332, %s333, %s334
      %p338 = pneg %p332
      %p339 = scmp.eq.s32.totalorder %s33, 1
      %p340 = por %p338, %p339
      %p341 = scmp.ne.s32.totalorder %s333, %s336
      %p342 = scmp.eq.s32.totalorder %s33, 0
      %p343 = por %p341, %p342
      %p344 = scmp.ne.s32.totalorder %s333, %s336
      %p345 = scmp.eq.s32.totalorder %s38, 1
      %p346 = por %p344, %p345
      %p347 = scmp.ne.s32.totalorder %s336, %s337
      %p348 = scmp.eq.s32.totalorder %s38, 0
      %p349 = por %p347, %p348
      %p350 = scmp.ne.s32.totalorder %s336, %s337
      %p351 = scmp.eq.s32.totalorder %s39, 1
      %p352 = por %p350, %p351
      %p354 = scmp.ne.s32.totalorder %s337, %s353
      %p355 = scmp.eq.s32.totalorder %s39, 0
      %p356 = por %p354, %p355
      %p357 = scmp.le.s32.totalorder 1, %s33
      %p358 = scmp.lt.s32.totalorder %s33, 3
      %p359 = pnand %p357, %p358
      %p360 = pneg %p359
      // Predicated region
      $region9: #{tpu_custom_call.1} parent=5 // pred_check
        _
      $region10: #{tpu_custom_call.1} parent=5 // pred_check_branch
        %362 = sbr.rel (%p359) target = $region12
      $region11: #{tpu_custom_call.1} parent=5 // pred_region
        %s363 = ssub.s32 %s33, 1
        // Predicated region
        $region13: #{tpu_custom_call.1} parent=11 // pred_check
          %p364 = pneg %p146
        $region14: #{tpu_custom_call.1} parent=11 // pred_check_branch
          %366 = sbr.rel (%p364) target = $region16
        $region15: #{tpu_custom_call.1} parent=11 // pred_region
          %s368 = ssub.s32 256, 256
          %369 = vsyncadd [#allocation11], %s368
          %s370 = sshll.u32 [#allocation10], 4
          %s371 = int_to_ptr.vmem [resolvable:$true] %s370
          %376 = dma.hbm_to_vmem [thread:$0]  %s3, 256, %s371, [#allocation11], 64, 64, 4
        $region16: #{tpu_custom_call.1} parent=11 // pred_fallthru
          _
        // Predicated region
        $region17: #{tpu_custom_call.1} parent=11 // pred_check
          %p377 = pneg %p167
        $region18: #{tpu_custom_call.1} parent=11 // pred_check_branch
          %379 = sbr.rel (%p377) target = $region20
        $region19: #{tpu_custom_call.1} parent=11 // pred_region
          _
        $region20: #{tpu_custom_call.1} parent=11 // pred_fallthru
          _
        // Predicated region
        $region21: #{tpu_custom_call.1} parent=11 // pred_check
          %p380 = pneg %p188
        $region22: #{tpu_custom_call.1} parent=11 // pred_check_branch
          %382 = sbr.rel (%p380) target = $region24
        $region23: #{tpu_custom_call.1} parent=11 // pred_region
          _
        $region24: #{tpu_custom_call.1} parent=11 // pred_fallthru
          _
        // Predicated region
        $region25: #{tpu_custom_call.1} parent=11 // pred_check
          %p383 = pneg %p209
        $region26: #{tpu_custom_call.1} parent=11 // pred_check_branch
          %385 = sbr.rel (%p383) target = $region28
        $region27: #{tpu_custom_call.1} parent=11 // pred_region
          _
        $region28: #{tpu_custom_call.1} parent=11 // pred_fallthru
          _
        // Predicated region
        $region29: #{tpu_custom_call.1} parent=11 // pred_check
          %p386 = pneg %p230
        $region30: #{tpu_custom_call.1} parent=11 // pred_check_branch
          %388 = sbr.rel (%p386) target = $region32
        $region31: #{tpu_custom_call.1} parent=11 // pred_region
          %s390 = ssub.s32 256, 256
          %391 = vsyncadd [#allocation11], %s390
          %s392 = sshll.u32 [#allocation12], 4
          %s393 = int_to_ptr.vmem [resolvable:$true] %s392
          %398 = dma.hbm_to_vmem [thread:$0]  %s7, 256, %s393, [#allocation11], 64, 64, 4
        $region32: #{tpu_custom_call.1} parent=11 // pred_fallthru
          _
        // Predicated region
        $region33: #{tpu_custom_call.1} parent=11 // pred_check
          %p399 = pneg %p251
        $region34: #{tpu_custom_call.1} parent=11 // pred_check_branch
          %401 = sbr.rel (%p399) target = $region36
        $region35: #{tpu_custom_call.1} parent=11 // pred_region
          %s403 = ssub.s32 16, 16
          %404 = vsyncadd [#allocation14], %s403
          %s406 = sshll.u32 [#allocation13], 4
          %s407 = int_to_ptr.vmem [resolvable:$true] %s406
          %409 = dma.hbm_to_vmem [thread:$0]  %s8, 16, %s407, [#allocation14]
        $region36: #{tpu_custom_call.1} parent=11 // pred_fallthru
          _
        // Predicated region
        $region37: #{tpu_custom_call.1} parent=11 // pred_check
          %p410 = pneg %p272
        $region38: #{tpu_custom_call.1} parent=11 // pred_check_branch
          %412 = sbr.rel (%p410) target = $region40
        $region39: #{tpu_custom_call.1} parent=11 // pred_region
          _
        $region40: #{tpu_custom_call.1} parent=11 // pred_fallthru
          _
        // Predicated region
        $region41: #{tpu_custom_call.1} parent=11 // pred_check
          %p413 = pneg %p293
        $region42: #{tpu_custom_call.1} parent=11 // pred_check_branch
          %415 = sbr.rel (%p413) target = $region44
        $region43: #{tpu_custom_call.1} parent=11 // pred_region
          _
        $region44: #{tpu_custom_call.1} parent=11 // pred_fallthru
          _
      $region12: #{tpu_custom_call.1} parent=5 // pred_fallthru
        _
      %p416 = scmp.lt.s32.totalorder %s33, 2
      // Predicated region
      $region45: #{tpu_custom_call.1} parent=5 // pred_check
        %p417 = pneg %p416
      $region46: #{tpu_custom_call.1} parent=5 // pred_check_branch
        %419 = sbr.rel (%p417) target = $region48
      $region47: #{tpu_custom_call.1} parent=5 // pred_region
        // Predicated region
        $region49: #{tpu_custom_call.1} parent=47 // pred_check
          %p420 = pneg %p67
        $region50: #{tpu_custom_call.1} parent=47 // pred_check_branch
          %422 = sbr.rel (%p420) target = $region52
        $region51: #{tpu_custom_call.1} parent=47 // pred_region
          %s423 = sand.u32 %s57, 1
          %s424 = scalar_lea.sflag [#allocation5], %s423
          %s425 = sand.u32 %s57, 1
          %s426 = smul.addr %s425, 4
          %s427 = scalar_lea.vmem [#allocation4], %s426
          %s429 = ssub.s32 64, 64
          %430 = vsyncadd %s424, %s429
          %s431 = sadd.s32 %s41, %s40
          %s432 = smul.addr %s431, 64
          %s433 = scalar_lea.hbm %s0, %s432
          %s435 = sshll.u32 %s427, 4
          %s436 = int_to_ptr.vmem [resolvable:$true] %s435
          %438 = dma.hbm_to_vmem [thread:$0]  %s433, 64, %s436, %s424
        $region52: #{tpu_custom_call.1} parent=47 // pred_fallthru
          _
        // Predicated region
        $region53: #{tpu_custom_call.1} parent=47 // pred_check
          %p439 = pneg %p93
        $region54: #{tpu_custom_call.1} parent=47 // pred_check_branch
          %441 = sbr.rel (%p439) target = $region56
        $region55: #{tpu_custom_call.1} parent=47 // pred_region
          %s442 = sand.u32 %s33, 1
          %s443 = scalar_lea.sflag [#allocation8], %s442
          %s444 = sand.u32 %s83, 1
          %s445 = smul.addr %s444, 4
          %s446 = scalar_lea.vmem [#allocation7], %s445
          %s448 = ssub.s32 64, 64
          %449 = vsyncadd %s443, %s448
          %s450 = smul.addr %s40, 64
          %s451 = scalar_lea.hbm %s1, %s450
          %s453 = sshll.u32 %s446, 4
          %s454 = int_to_ptr.vmem [resolvable:$true] %s453
          %456 = dma.hbm_to_vmem [thread:$0]  %s451, 64, %s454, %s443
        $region56: #{tpu_custom_call.1} parent=47 // pred_fallthru
          _
        // Predicated region
        $region57: #{tpu_custom_call.1} parent=47 // pred_check
          %p457 = pneg %p119
        $region58: #{tpu_custom_call.1} parent=47 // pred_check_branch
          %459 = sbr.rel (%p457) target = $region60
        $region59: #{tpu_custom_call.1} parent=47 // pred_region
          %s460 = sand.u32 %s33, 1
          %s461 = scalar_lea.sflag [#allocation8], %s460
          %s462 = sand.u32 %s109, 1
          %s463 = smul.addr %s462, 4
          %s464 = scalar_lea.vmem [#allocation9], %s463
          %s466 = ssub.s32 64, 64
          %467 = vsyncadd %s461, %s466
          %s468 = smul.addr %s40, 64
          %s469 = scalar_lea.hbm %s2, %s468
          %s471 = sshll.u32 %s464, 4
          %s472 = int_to_ptr.vmem [resolvable:$true] %s471
          %474 = dma.hbm_to_vmem [thread:$0]  %s469, 64, %s472, %s461
        $region60: #{tpu_custom_call.1} parent=47 // pred_fallthru
          _
      $region48: #{tpu_custom_call.1} parent=5 // pred_fallthru
        _
      %p475 = scmp.le.s32.totalorder 1, %s33
      %p476 = scmp.lt.s32.totalorder %s33, 3
      %p477 = pnand %p475, %p476
      %p478 = pneg %p477
      // Predicated region
      $region61: #{tpu_custom_call.1} parent=5 // pred_check
        _
      $region62: #{tpu_custom_call.1} parent=5 // pred_check_branch
        %480 = sbr.rel (%p477) target = $region64
      $region63: #{tpu_custom_call.1} parent=5 // pred_region
        %s481 = ssub.s32 %s33, 1
        %s482 = sand.u32 %s60, 1
        %s483 = scalar_lea.sflag [#allocation5], %s482
        %s484 = sand.u32 %s60, 1
        %s485 = smul.addr %s484, 4
        %s486 = scalar_lea.vmem [#allocation4], %s485
        // Predicated region
        $region65: #{tpu_custom_call.1} parent=63 // pred_check
          %p487 = pneg %p73
        $region66: #{tpu_custom_call.1} parent=63 // pred_check_branch
          %489 = sbr.rel (%p487) target = $region68
        $region67: #{tpu_custom_call.1} parent=63 // pred_region
          %490 = dma.done %s483, 64
        $region68: #{tpu_custom_call.1} parent=63 // pred_fallthru
          _
        %s491 = sand.u32 %s38, 1
        %s492 = scalar_lea.sflag [#allocation8], %s491
        %s493 = sand.u32 %s86, 1
        %s494 = smul.addr %s493, 4
        %s495 = scalar_lea.vmem [#allocation7], %s494
        // Predicated region
        $region69: #{tpu_custom_call.1} parent=63 // pred_check
          %p496 = pneg %p99
        $region70: #{tpu_custom_call.1} parent=63 // pred_check_branch
          %498 = sbr.rel (%p496) target = $region72
        $region71: #{tpu_custom_call.1} parent=63 // pred_region
          %499 = dma.done %s492, 64
        $region72: #{tpu_custom_call.1} parent=63 // pred_fallthru
          _
        %s500 = sand.u32 %s38, 1
        %s501 = scalar_lea.sflag [#allocation8], %s500
        %s502 = sand.u32 %s112, 1
        %s503 = smul.addr %s502, 4
        %s504 = scalar_lea.vmem [#allocation9], %s503
        // Predicated region
        $region73: #{tpu_custom_call.1} parent=63 // pred_check
          %p505 = pneg %p125
        $region74: #{tpu_custom_call.1} parent=63 // pred_check_branch
          %507 = sbr.rel (%p505) target = $region76
        $region75: #{tpu_custom_call.1} parent=63 // pred_region
          %508 = dma.done %s501, 64
        $region76: #{tpu_custom_call.1} parent=63 // pred_fallthru
          _
        // Predicated region
        $region77: #{tpu_custom_call.1} parent=63 // pred_check
          %p509 = pneg %p146
        $region78: #{tpu_custom_call.1} parent=63 // pred_check_branch
          %511 = sbr.rel (%p509) target = $region80
        $region79: #{tpu_custom_call.1} parent=63 // pred_region
          %512 = dma.done [#allocation11], 256
        $region80: #{tpu_custom_call.1} parent=63 // pred_fallthru
          _
        // Predicated region
        $region81: #{tpu_custom_call.1} parent=63 // pred_check
          %p513 = pneg %p230
        $region82: #{tpu_custom_call.1} parent=63 // pred_check_branch
          %515 = sbr.rel (%p513) target = $region84
        $region83: #{tpu_custom_call.1} parent=63 // pred_region
          %516 = dma.done [#allocation11], 256
        $region84: #{tpu_custom_call.1} parent=63 // pred_fallthru
          _
        // Predicated region
        $region85: #{tpu_custom_call.1} parent=63 // pred_check
          %p517 = pneg %p251
        $region86: #{tpu_custom_call.1} parent=63 // pred_check_branch
          %519 = sbr.rel (%p517) target = $region88
        $region87: #{tpu_custom_call.1} parent=63 // pred_region
          %520 = dma.done [#allocation14], 16
        $region88: #{tpu_custom_call.1} parent=63 // pred_fallthru
          _
        %s521 = sand.u32 %s60, 1
        %s522 = scalar_lea.sflag [#allocation5], %s521
        %s523 = sand.u32 %s60, 1
        %s524 = smul.addr %s523, 4
        %s525 = scalar_lea.vmem [#allocation4], %s524
        %p526 = pneg %p73
        %p527 = pneg %p70
        %s528 = sand.u32 %s38, 1
        %s529 = scalar_lea.sflag [#allocation8], %s528
        %s530 = sand.u32 %s86, 1
        %s531 = smul.addr %s530, 4
        %s532 = scalar_lea.vmem [#allocation7], %s531
        %p533 = pneg %p99
        %p534 = pneg %p96
        %s535 = sand.u32 %s38, 1
        %s536 = scalar_lea.sflag [#allocation8], %s535
        %s537 = sand.u32 %s112, 1
        %s538 = smul.addr %s537, 4
        %s539 = scalar_lea.vmem [#allocation9], %s538
        %p540 = pneg %p125
        %p541 = pneg %p122
        %p542 = pneg %p146
        %p543 = pneg %p143
        %p544 = pneg %p167
        %p545 = pneg %p164
        %p546 = pneg %p188
        %p547 = pneg %p185
        %p548 = pneg %p209
        %p549 = pneg %p206
        %p550 = pneg %p230
        %p551 = pneg %p227
        %p552 = pneg %p251
        %p553 = pneg %p248
        %p554 = pneg %p272
        %p555 = pneg %p269
        %p556 = pneg %p293
        %p557 = pneg %p290
        %p558 = pneg %p321
        %p559 = pneg %p318
        %s560 = sand.u32 %s308, 1
        %s561 = scalar_lea.sflag [#allocation6], %s560
        %s562 = sand.u32 %s308, 1
        %s563 = smul.addr %s562, 8
        %s564 = scalar_lea.vmem [#allocation15], %s563
        %p565 = pneg %p349
        %p566 = pneg %p346
        %s567 = sand.u32 %s336, 1
        %s568 = scalar_lea.sflag [#allocation17], %s567
        %s569 = sand.u32 %s336, 1
        %s570 = smul.addr %s569, 32
        %s571 = scalar_lea.vmem [#allocation16], %s570
        %p573 = scmp.eq.s32.totalorder %s43, 0
        // Predicated region
        $region89: #{tpu_custom_call.1} parent=63 // pred_check
          %p574 = pneg %p573
        $region90: #{tpu_custom_call.1} parent=63 // pred_check_branch
          %576 = sbr.rel (%p574) target = $region92
        $region91: #{tpu_custom_call.1} parent=63 // pred_region
          %v577 = vld [vmem:[%s495] sm:$0xf]
          %v578 = vld [vmem:[%s504] sm:$0xf]
          %v579 = vld [vmem:[%s5] sm:$0xf]
          %v580 = vld [vmem:[%s5 + $0x4] sm:$0xf]
          %v581 = vld [vmem:[%s5 + $0x8] sm:$0xf]
          %v582 = vld [vmem:[%s5 + $0xc] sm:$0xf]
          %v583 = vld [vmem:[%s6] sm:$0x1]
          %v585 = vlaneseq
          %v586 = vshrl.u32 %v585, 7
          %v587 = vsub.s32 0, %v586
          %v588 = vrot.slane %v583, %v587
          %v594 = vunpack.c.l.b16 %v579
          %v595 = vunpack.c.l.b16 %v580
          %v596 = vunpack.c.l.b16 %v581
          %v597 = vunpack.c.l.b16 %v582
          %v598 = vpack.c.b16 %v595, %v594
          %v599 = vpack.c.b16 %v597, %v596
          %vm602 = vcmask 261120
          %v604 = vsel %vm602, %v577, 0
          %606 = vmatprep.subr.bf16.mxu0 0
          %607 = vmatpush1.bf16.msra.mxu0 %v598
          %608 = vmatprep.subr.bf16.mxu0 0
          %609 = vmatpush1.bf16.msra.mxu0 %v599
          %610 = vmatprep.subr.bf16.mxu0 0
          %611 = vmatpush1.bf16.msra.mxu0 0
          %612 = vmatprep.subr.bf16.mxu0 0
          %613 = vmatpush1.bf16.msra.mxu0 0
          %614 = vmatprep.subr.bf16.mxu0 0
          %615 = vmatpush1.bf16.msra.mxu0 0
          %616 = vmatprep.subr.bf16.mxu0 0
          %617 = vmatpush1.bf16.msra.mxu0 0
          %618 = vmatprep.subr.bf16.mxu0 0
          %619 = vmatpush1.bf16.msra.mxu0 0
          %620 = vmatprep.subr.bf16.mxu0 0
          %621 = vmatpush1.bf16.msra.mxu0 0
          %622 = vmatprep.subr.bf16.mxu0 0
          %623 = vmatpush1.bf16.msra.mxu0 0
          %624 = vmatprep.subr.bf16.mxu0 0
          %625 = vmatpush1.bf16.msra.mxu0 0
          %626 = vmatprep.subr.bf16.mxu0 0
          %627 = vmatpush1.bf16.msra.mxu0 0
          %628 = vmatprep.subr.bf16.mxu0 0
          %629 = vmatpush1.bf16.msra.mxu0 0
          %630 = vmatprep.subr.bf16.mxu0 0
          %631 = vmatpush1.bf16.msra.mxu0 0
          %632 = vmatprep.subr.bf16.mxu0 0
          %633 = vmatpush1.bf16.msra.mxu0 0
          %634 = vmatprep.subr.bf16.mxu0 0
          %635 = vmatpush1.bf16.msra.mxu0 0
          %636 = vmatprep.subr.bf16.mxu0 0
          %637 = vmatpush1.bf16.msra.mxu0 0
          %638 = vmatprep.mubr.bf16.mxu0 0
          %639 = vmatmul.mubr.bf16.gmra.mrb[0].mxu0 %v604
          %v640 = vpop.f32.mrb[0].mxu0
          %v641 = vadd.f32 %v588, %v640
          %v642 = vpop.f32.mrb[0].mxu0
          %v643 = vpop.f32.mrb[0].mxu0
          %v644 = vpop.f32.mrb[0].mxu0
          %645 = vdwg.mxu0
          %v646 = vld [vmem:[#allocation12] sm:$0xf]
          %v647 = vld [vmem:[#allocation12 + $0x4] sm:$0xf]
          %v648 = vld [vmem:[#allocation12 + $0x8] sm:$0xf]
          %v649 = vld [vmem:[#allocation12 + $0xc] sm:$0xf]
          %v650 = vld [vmem:[#allocation13] sm:$0x1]
          %v652 = vlaneseq
          %v653 = vshrl.u32 %v652, 7
          %v654 = vsub.s32 0, %v653
          %v655 = vrot.slane %v650, %v654
          %v661 = vunpack.c.l.b16 %v646
          %v662 = vunpack.c.l.b16 %v647
          %v663 = vunpack.c.l.b16 %v648
          %v664 = vunpack.c.l.b16 %v649
          %v665 = vpack.c.b16 %v662, %v661
          %v666 = vpack.c.b16 %v664, %v663
          %v670 = vsel %vm602, %v578, 0
          %672 = vmatprep.subr.bf16.mxu0 0
          %673 = vmatpush1.bf16.msra.mxu0 %v665
          %674 = vmatprep.subr.bf16.mxu0 0
          %675 = vmatpush1.bf16.msra.mxu0 %v666
          %676 = vmatprep.subr.bf16.mxu0 0
          %677 = vmatpush1.bf16.msra.mxu0 0
          %678 = vmatprep.subr.bf16.mxu0 0
          %679 = vmatpush1.bf16.msra.mxu0 0
          %680 = vmatprep.subr.bf16.mxu0 0
          %681 = vmatpush1.bf16.msra.mxu0 0
          %682 = vmatprep.subr.bf16.mxu0 0
          %683 = vmatpush1.bf16.msra.mxu0 0
          %684 = vmatprep.subr.bf16.mxu0 0
          %685 = vmatpush1.bf16.msra.mxu0 0
          %686 = vmatprep.subr.bf16.mxu0 0
          %687 = vmatpush1.bf16.msra.mxu0 0
          %688 = vmatprep.subr.bf16.mxu0 0
          %689 = vmatpush1.bf16.msra.mxu0 0
          %690 = vmatprep.subr.bf16.mxu0 0
          %691 = vmatpush1.bf16.msra.mxu0 0
          %692 = vmatprep.subr.bf16.mxu0 0
          %693 = vmatpush1.bf16.msra.mxu0 0
          %694 = vmatprep.subr.bf16.mxu0 0
          %695 = vmatpush1.bf16.msra.mxu0 0
          %696 = vmatprep.subr.bf16.mxu0 0
          %697 = vmatpush1.bf16.msra.mxu0 0
          %698 = vmatprep.subr.bf16.mxu0 0
          %699 = vmatpush1.bf16.msra.mxu0 0
          %700 = vmatprep.subr.bf16.mxu0 0
          %701 = vmatpush1.bf16.msra.mxu0 0
          %702 = vmatprep.subr.bf16.mxu0 0
          %703 = vmatpush1.bf16.msra.mxu0 0
          %704 = vmatprep.mubr.bf16.mxu0 0
          %705 = vmatmul.mubr.bf16.gmra.mrb[0].mxu0 %v670
          %v706 = vpop.f32.mrb[0].mxu0
          %v707 = vadd.f32 %v655, %v706
          %v708 = vpop.f32.mrb[0].mxu0
          %v709 = vpop.f32.mrb[0].mxu0
          %v710 = vpop.f32.mrb[0].mxu0
          %711 = vdwg.mxu0
          %713 = vrot.lane.b32.xlu0 %v641, 120
          %v714 = vpop.permute.xlu0 %713
          %716 = vrot.lane.b32.xlu0 %v641, 112
          %v717 = vpop.permute.xlu0 %716
          %719 = vrot.lane.b32.xlu0 %v641, 104
          %v720 = vpop.permute.xlu0 %719
          %v722 = vpack.c.bf16 %v641, %v641
          %v723 = vpack.c.bf16 %v714, %v714
          %v724 = vpack.c.bf16 %v717, %v717
          %v725 = vpack.c.bf16 %v720, %v720
          %vm726 = vcmask 60416
          %727 = vst.msk [vmem:[#allocation2] sm:$0xf] %vm726, %v722
          %728 = vst.msk [vmem:[#allocation2 + $0x4] sm:$0xf] %vm726, %v723
          %729 = vst.msk [vmem:[#allocation2 + $0x8] sm:$0xf] %vm726, %v724
          %730 = vst.msk [vmem:[#allocation2 + $0xc] sm:$0xf] %vm726, %v725
          %732 = vrot.lane.b32.xlu0 %v707, 120
          %v733 = vpop.permute.xlu0 %732
          %735 = vrot.lane.b32.xlu0 %v707, 112
          %v736 = vpop.permute.xlu0 %735
          %738 = vrot.lane.b32.xlu0 %v707, 104
          %v739 = vpop.permute.xlu0 %738
          %v741 = vpack.c.bf16 %v707, %v707
          %v742 = vpack.c.bf16 %v733, %v733
          %v743 = vpack.c.bf16 %v736, %v736
          %v744 = vpack.c.bf16 %v739, %v739
          %745 = vst.msk [vmem:[#allocation3] sm:$0xf] %vm726, %v741
          %746 = vst.msk [vmem:[#allocation3 + $0x4] sm:$0xf] %vm726, %v742
          %747 = vst.msk [vmem:[#allocation3 + $0x8] sm:$0xf] %vm726, %v743
          %748 = vst.msk [vmem:[#allocation3 + $0xc] sm:$0xf] %vm726, %v744
        $region92: #{tpu_custom_call.1} parent=63 // pred_fallthru
          _
        %v749 = vld [vmem:[%s486] sm:$0xf]
        %v750 = vld [vmem:[#allocation10] sm:$0xf]
        %v751 = vld [vmem:[#allocation10 + $0x4] sm:$0xf]
        %v752 = vld [vmem:[#allocation10 + $0x8] sm:$0xf]
        %v753 = vld [vmem:[#allocation10 + $0xc] sm:$0xf]
        %v754 = vld [vmem:[%s4] sm:$0x1]
        %v756 = vlaneseq
        %v757 = vshrl.u32 %v756, 7
        %v758 = vsub.s32 0, %v757
        %v759 = vrot.slane %v754, %v758
        %v765 = vunpack.c.l.b16 %v750
        %v766 = vunpack.c.l.b16 %v751
        %v767 = vunpack.c.l.b16 %v752
        %v768 = vunpack.c.l.b16 %v753
        %v769 = vpack.c.b16 %v766, %v765
        %v770 = vpack.c.b16 %v768, %v767
        %vm773 = vcmask 261120
        %v775 = vsel %vm773, %v749, 0
        %777 = vmatprep.subr.bf16.mxu0 0
        %778 = vmatpush1.bf16.msra.mxu0 %v769
        %779 = vmatprep.subr.bf16.mxu0 0
        %780 = vmatpush1.bf16.msra.mxu0 %v770
        %781 = vmatprep.subr.bf16.mxu0 0
        %782 = vmatpush1.bf16.msra.mxu0 0
        %783 = vmatprep.subr.bf16.mxu0 0
        %784 = vmatpush1.bf16.msra.mxu0 0
        %785 = vmatprep.subr.bf16.mxu0 0
        %786 = vmatpush1.bf16.msra.mxu0 0
        %787 = vmatprep.subr.bf16.mxu0 0
        %788 = vmatpush1.bf16.msra.mxu0 0
        %789 = vmatprep.subr.bf16.mxu0 0
        %790 = vmatpush1.bf16.msra.mxu0 0
        %791 = vmatprep.subr.bf16.mxu0 0
        %792 = vmatpush1.bf16.msra.mxu0 0
        %793 = vmatprep.subr.bf16.mxu0 0
        %794 = vmatpush1.bf16.msra.mxu0 0
        %795 = vmatprep.subr.bf16.mxu0 0
        %796 = vmatpush1.bf16.msra.mxu0 0
        %797 = vmatprep.subr.bf16.mxu0 0
        %798 = vmatpush1.bf16.msra.mxu0 0
        %799 = vmatprep.subr.bf16.mxu0 0
        %800 = vmatpush1.bf16.msra.mxu0 0
        %801 = vmatprep.subr.bf16.mxu0 0
        %802 = vmatpush1.bf16.msra.mxu0 0
        %803 = vmatprep.subr.bf16.mxu0 0
        %804 = vmatpush1.bf16.msra.mxu0 0
        %805 = vmatprep.subr.bf16.mxu0 0
        %806 = vmatpush1.bf16.msra.mxu0 0
        %807 = vmatprep.subr.bf16.mxu0 0
        %808 = vmatpush1.bf16.msra.mxu0 0
        %809 = vmatprep.mubr.bf16.mxu0 0
        %810 = vmatmul.mubr.bf16.gmra.mrb[0].mxu0 %v775
        %v811 = vpop.f32.mrb[0].mxu0
        %v812 = vadd.f32 %v759, %v811
        %v813 = vpop.f32.mrb[0].mxu0
        %v814 = vpop.f32.mrb[0].mxu0
        %v815 = vpop.f32.mrb[0].mxu0
        %816 = vdwg.mxu0
        %818 = vrot.lane.b32.xlu0 %v812, 120
        %v819 = vpop.permute.xlu0 %818
        %821 = vrot.lane.b32.xlu0 %v812, 112
        %v822 = vpop.permute.xlu0 %821
        %824 = vrot.lane.b32.xlu0 %v812, 104
        %v825 = vpop.permute.xlu0 %824
        %v827 = vmul.f32 %v812, 0.35355338
        %v828 = vmul.f32 %v819, 0.35355338
        %v829 = vmul.f32 %v822, 0.35355338
        %v830 = vmul.f32 %v825, 0.35355338
        %v831 = vpack.c.bf16 %v827, %v827
        %v832 = vpack.c.bf16 %v828, %v828
        %v833 = vpack.c.bf16 %v829, %v829
        %v834 = vpack.c.bf16 %v830, %v830
        %v835 = vld [vmem:[#allocation2] sm:$0xf]
        %v836 = vld [vmem:[#allocation2 + $0x4] sm:$0xf]
        %v837 = vld [vmem:[#allocation2 + $0x8] sm:$0xf]
        %v838 = vld [vmem:[#allocation2 + $0xc] sm:$0xf]
        %vm839 = vcmask 64512
        %v841 = vsel %vm839, %v831, 0
        %v844 = vsel %vm839, %v835, 0
        %846 = vmatprep.subr.bf16.mxu0 0
        %847 = vmatpush1.bf16.xpose.msra.mxu0 %v844
        %848 = vmatprep.subr.bf16.mxu0 0
        %849 = vmatpush1.bf16.xpose.msra.mxu0 0
        %850 = vmatprep.subr.bf16.mxu0 0
        %851 = vmatpush1.bf16.xpose.msra.mxu0 0
        %852 = vmatprep.subr.bf16.mxu0 0
        %853 = vmatpush1.bf16.xpose.msra.mxu0 0
        %854 = vmatprep.subr.bf16.mxu0 0
        %855 = vmatpush1.bf16.xpose.msra.mxu0 0
        %856 = vmatprep.subr.bf16.mxu0 0
        %857 = vmatpush1.bf16.xpose.msra.mxu0 0
        %858 = vmatprep.subr.bf16.mxu0 0
        %859 = vmatpush1.bf16.xpose.msra.mxu0 0
        %860 = vmatprep.subr.bf16.mxu0 0
        %861 = vmatpush1.bf16.xpose.msra.mxu0 0
        %862 = vmatprep.subr.bf16.mxu0 0
        %863 = vmatpush1.bf16.xpose.msra.mxu0 0
        %864 = vmatprep.subr.bf16.mxu0 0
        %865 = vmatpush1.bf16.xpose.msra.mxu0 0
        %866 = vmatprep.subr.bf16.mxu0 0
        %867 = vmatpush1.bf16.xpose.msra.mxu0 0
        %868 = vmatprep.subr.bf16.mxu0 0
        %869 = vmatpush1.bf16.xpose.msra.mxu0 0
        %870 = vmatprep.subr.bf16.mxu0 0
        %871 = vmatpush1.bf16.xpose.msra.mxu0 0
        %872 = vmatprep.subr.bf16.mxu0 0
        %873 = vmatpush1.bf16.xpose.msra.mxu0 0
        %874 = vmatprep.subr.bf16.mxu0 0
        %875 = vmatpush1.bf16.xpose.msra.mxu0 0
        %876 = vmatprep.subr.bf16.mxu0 0
        %877 = vmatpush1.bf16.xpose.msra.mxu0 0
        %878 = vmatprep.mubr.bf16.mxu0 0
        %879 = vmatmul.mubr.bf16.gmra.mrb[0].mxu0 %v841
        %v880 = vpop.f32.mrb[0].mxu0
        %v881 = vadd.f32 0.0, %v880
        %v882 = vpop.f32.mrb[0].mxu0
        %v883 = vpop.f32.mrb[0].mxu0
        %v884 = vpop.f32.mrb[0].mxu0
        %885 = vdwg.mxu0
        %v887 = vsel %vm839, %v832, 0
        %v890 = vsel %vm839, %v836, 0
        %892 = vmatprep.subr.bf16.mxu0 0
        %893 = vmatpush1.bf16.xpose.msra.mxu0 %v890
        %894 = vmatprep.subr.bf16.mxu0 0
        %895 = vmatpush1.bf16.xpose.msra.mxu0 0
        %896 = vmatprep.subr.bf16.mxu0 0
        %897 = vmatpush1.bf16.xpose.msra.mxu0 0
        %898 = vmatprep.subr.bf16.mxu0 0
        %899 = vmatpush1.bf16.xpose.msra.mxu0 0
        %900 = vmatprep.subr.bf16.mxu0 0
        %901 = vmatpush1.bf16.xpose.msra.mxu0 0
        %902 = vmatprep.subr.bf16.mxu0 0
        %903 = vmatpush1.bf16.xpose.msra.mxu0 0
        %904 = vmatprep.subr.bf16.mxu0 0
        %905 = vmatpush1.bf16.xpose.msra.mxu0 0
        %906 = vmatprep.subr.bf16.mxu0 0
        %907 = vmatpush1.bf16.xpose.msra.mxu0 0
        %908 = vmatprep.subr.bf16.mxu0 0
        %909 = vmatpush1.bf16.xpose.msra.mxu0 0
        %910 = vmatprep.subr.bf16.mxu0 0
        %911 = vmatpush1.bf16.xpose.msra.mxu0 0
        %912 = vmatprep.subr.bf16.mxu0 0
        %913 = vmatpush1.bf16.xpose.msra.mxu0 0
        %914 = vmatprep.subr.bf16.mxu0 0
        %915 = vmatpush1.bf16.xpose.msra.mxu0 0
        %916 = vmatprep.subr.bf16.mxu0 0
        %917 = vmatpush1.bf16.xpose.msra.mxu0 0
        %918 = vmatprep.subr.bf16.mxu0 0
        %919 = vmatpush1.bf16.xpose.msra.mxu0 0
        %920 = vmatprep.subr.bf16.mxu0 0
        %921 = vmatpush1.bf16.xpose.msra.mxu0 0
        %922 = vmatprep.subr.bf16.mxu0 0
        %923 = vmatpush1.bf16.xpose.msra.mxu0 0
        %924 = vmatprep.mubr.bf16.mxu0 0
        %925 = vmatmul.mubr.bf16.gmra.mrb[0].mxu0 %v887
        %v926 = vpop.f32.mrb[0].mxu0
        %v927 = vadd.f32 0.0, %v926
        %v928 = vpop.f32.mrb[0].mxu0
        %v929 = vpop.f32.mrb[0].mxu0
        %v930 = vpop.f32.mrb[0].mxu0
        %931 = vdwg.mxu0
        %v933 = vsel %vm839, %v833, 0
        %v936 = vsel %vm839, %v837, 0
        %938 = vmatprep.subr.bf16.mxu0 0
        %939 = vmatpush1.bf16.xpose.msra.mxu0 %v936
        %940 = vmatprep.subr.bf16.mxu0 0
        %941 = vmatpush1.bf16.xpose.msra.mxu0 0
        %942 = vmatprep.subr.bf16.mxu0 0
        %943 = vmatpush1.bf16.xpose.msra.mxu0 0
        %944 = vmatprep.subr.bf16.mxu0 0
        %945 = vmatpush1.bf16.xpose.msra.mxu0 0
        %946 = vmatprep.subr.bf16.mxu0 0
        %947 = vmatpush1.bf16.xpose.msra.mxu0 0
        %948 = vmatprep.subr.bf16.mxu0 0
        %949 = vmatpush1.bf16.xpose.msra.mxu0 0
        %950 = vmatprep.subr.bf16.mxu0 0
        %951 = vmatpush1.bf16.xpose.msra.mxu0 0
        %952 = vmatprep.subr.bf16.mxu0 0
        %953 = vmatpush1.bf16.xpose.msra.mxu0 0
        %954 = vmatprep.subr.bf16.mxu0 0
        %955 = vmatpush1.bf16.xpose.msra.mxu0 0
        %956 = vmatprep.subr.bf16.mxu0 0
        %957 = vmatpush1.bf16.xpose.msra.mxu0 0
        %958 = vmatprep.subr.bf16.mxu0 0
        %959 = vmatpush1.bf16.xpose.msra.mxu0 0
        %960 = vmatprep.subr.bf16.mxu0 0
        %961 = vmatpush1.bf16.xpose.msra.mxu0 0
        %962 = vmatprep.subr.bf16.mxu0 0
        %963 = vmatpush1.bf16.xpose.msra.mxu0 0
        %964 = vmatprep.subr.bf16.mxu0 0
        %965 = vmatpush1.bf16.xpose.msra.mxu0 0
        %966 = vmatprep.subr.bf16.mxu0 0
        %967 = vmatpush1.bf16.xpose.msra.mxu0 0
        %968 = vmatprep.subr.bf16.mxu0 0
        %969 = vmatpush1.bf16.xpose.msra.mxu0 0
        %970 = vmatprep.mubr.bf16.mxu0 0
        %971 = vmatmul.mubr.bf16.gmra.mrb[0].mxu0 %v933
        %v972 = vpop.f32.mrb[0].mxu0
        %v973 = vadd.f32 0.0, %v972
        %v974 = vpop.f32.mrb[0].mxu0
        %v975 = vpop.f32.mrb[0].mxu0
        %v976 = vpop.f32.mrb[0].mxu0
        %977 = vdwg.mxu0
        %v979 = vsel %vm839, %v834, 0
        %v982 = vsel %vm839, %v838, 0
        %984 = vmatprep.subr.bf16.mxu0 0
        %985 = vmatpush1.bf16.xpose.msra.mxu0 %v982
        %986 = vmatprep.subr.bf16.mxu0 0
        %987 = vmatpush1.bf16.xpose.msra.mxu0 0
        %988 = vmatprep.subr.bf16.mxu0 0
        %989 = vmatpush1.bf16.xpose.msra.mxu0 0
        %990 = vmatprep.subr.bf16.mxu0 0
        %991 = vmatpush1.bf16.xpose.msra.mxu0 0
        %992 = vmatprep.subr.bf16.mxu0 0
        %993 = vmatpush1.bf16.xpose.msra.mxu0 0
        %994 = vmatprep.subr.bf16.mxu0 0
        %995 = vmatpush1.bf16.xpose.msra.mxu0 0
        %996 = vmatprep.subr.bf16.mxu0 0
        %997 = vmatpush1.bf16.xpose.msra.mxu0 0
        %998 = vmatprep.subr.bf16.mxu0 0
        %999 = vmatpush1.bf16.xpose.msra.mxu0 0
        %1000 = vmatprep.subr.bf16.mxu0 0
        %1001 = vmatpush1.bf16.xpose.msra.mxu0 0
        %1002 = vmatprep.subr.bf16.mxu0 0
        %1003 = vmatpush1.bf16.xpose.msra.mxu0 0
        %1004 = vmatprep.subr.bf16.mxu0 0
        %1005 = vmatpush1.bf16.xpose.msra.mxu0 0
        %1006 = vmatprep.subr.bf16.mxu0 0
        %1007 = vmatpush1.bf16.xpose.msra.mxu0 0
        %1008 = vmatprep.subr.bf16.mxu0 0
        %1009 = vmatpush1.bf16.xpose.msra.mxu0 0
        %1010 = vmatprep.subr.bf16.mxu0 0
        %1011 = vmatpush1.bf16.xpose.msra.mxu0 0
        %1012 = vmatprep.subr.bf16.mxu0 0
        %1013 = vmatpush1.bf16.xpose.msra.mxu0 0
        %1014 = vmatprep.subr.bf16.mxu0 0
        %1015 = vmatpush1.bf16.xpose.msra.mxu0 0
        %1016 = vmatprep.mubr.bf16.mxu0 0
        %1017 = vmatmul.mubr.bf16.gmra.mrb[0].mxu0 %v979
        %v1018 = vpop.f32.mrb[0].mxu0
        %v1019 = vadd.f32 0.0, %v1018
        %v1020 = vpop.f32.mrb[0].mxu0
        %v1021 = vpop.f32.mrb[0].mxu0
        %v1022 = vpop.f32.mrb[0].mxu0
        %1023 = vdwg.mxu0
        %v1024 = vsel %vm839, %v881, -inf
        %1025 = vmax.xlane.f32.xlu0 %v1024
        %v1026 = vpop.xlane.xlu0 %1025
        %v1027 = vsel %vm839, %v927, -inf
        %1028 = vmax.xlane.f32.xlu0 %v1027
        %v1029 = vpop.xlane.xlu0 %1028
        %v1030 = vsel %vm839, %v973, -inf
        %1031 = vmax.xlane.f32.xlu0 %v1030
        %v1032 = vpop.xlane.xlu0 %1031
        %v1033 = vsel %vm839, %v1019, -inf
        %1034 = vmax.xlane.f32.xlu0 %v1033
        %v1035 = vpop.xlane.xlu0 %1034
        %v1036 = vsub.f32 %v881, %v1026
        %v1037 = vsub.f32 %v927, %v1029
        %v1038 = vsub.f32 %v973, %v1032
        %v1039 = vsub.f32 %v1019, %v1035
        %v1040 = vmul.f32 %v1036, 1.442695
        %v1041 = vpow.pop %v1040
        %v1042 = vmul.f32 %v1037, 1.442695
        %v1043 = vpow.pop %v1042
        %v1044 = vmul.f32 %v1038, 1.442695
        %v1045 = vpow.pop %v1044
        %v1046 = vmul.f32 %v1039, 1.442695
        %v1047 = vpow.pop %v1046
        %v1048 = vsel %vm839, %v1041, 0.0
        %1049 = vadd.xlane.f32.xlu0 %v1048
        %v1050 = vpop.xlane.xlu0 %1049
        %v1051 = vsel %vm839, %v1043, 0.0
        %1052 = vadd.xlane.f32.xlu0 %v1051
        %v1053 = vpop.xlane.xlu0 %1052
        %v1054 = vsel %vm839, %v1045, 0.0
        %1055 = vadd.xlane.f32.xlu0 %v1054
        %v1056 = vpop.xlane.xlu0 %1055
        %v1057 = vsel %vm839, %v1047, 0.0
        %1058 = vadd.xlane.f32.xlu0 %v1057
        %v1059 = vpop.xlane.xlu0 %1058
        %v1060 = vrcp.pop %v1050
        %v1061 = vrcp.pop %v1053
        %v1062 = vrcp.pop %v1056
        %v1063 = vrcp.pop %v1059
        %v1064 = vmul.f32 %v1041, %v1060
        %v1065 = vmul.f32 %v1043, %v1061
        %v1066 = vmul.f32 %v1045, %v1062
        %v1067 = vmul.f32 %v1047, %v1063
        %1068 = vst.msk [vmem:[%s571] sm:$0xff] %vm839, %v1064
        %1069 = vst.msk [vmem:[%s571 + $0x8] sm:$0xff] %vm839, %v1065
        %1070 = vst.msk [vmem:[%s571 + $0x10] sm:$0xff] %vm839, %v1066
        %1071 = vst.msk [vmem:[%s571 + $0x18] sm:$0xff] %vm839, %v1067
        %v1072 = vpack.c.bf16 %v1064, %v1064
        %v1073 = vpack.c.bf16 %v1065, %v1065
        %v1074 = vpack.c.bf16 %v1066, %v1066
        %v1075 = vpack.c.bf16 %v1067, %v1067
        %v1076 = vld [vmem:[#allocation3] sm:$0xf]
        %v1077 = vld [vmem:[#allocation3 + $0x4] sm:$0xf]
        %v1078 = vld [vmem:[#allocation3 + $0x8] sm:$0xf]
        %v1079 = vld [vmem:[#allocation3 + $0xc] sm:$0xf]
        %v1081 = vsel %vm839, %v1072, 0
        %vm1083 = vcmask 1043456
        %v1085 = vsel %vm1083, %v1076, 0
        %1087 = vmatprep.subr.bf16.mxu0 0
        %1088 = vmatpush1.bf16.msra.mxu0 %v1085
        %1089 = vmatprep.subr.bf16.mxu0 0
        %1090 = vmatpush1.bf16.msra.mxu0 0
        %1091 = vmatprep.subr.bf16.mxu0 0
        %1092 = vmatpush1.bf16.msra.mxu0 0
        %1093 = vmatprep.subr.bf16.mxu0 0
        %1094 = vmatpush1.bf16.msra.mxu0 0
        %1095 = vmatprep.subr.bf16.mxu0 0
        %1096 = vmatpush1.bf16.msra.mxu0 0
        %1097 = vmatprep.subr.bf16.mxu0 0
        %1098 = vmatpush1.bf16.msra.mxu0 0
        %1099 = vmatprep.subr.bf16.mxu0 0
        %1100 = vmatpush1.bf16.msra.mxu0 0
        %1101 = vmatprep.subr.bf16.mxu0 0
        %1102 = vmatpush1.bf16.msra.mxu0 0
        %1103 = vmatprep.subr.bf16.mxu0 0
        %1104 = vmatpush1.bf16.msra.mxu0 0
        %1105 = vmatprep.subr.bf16.mxu0 0
        %1106 = vmatpush1.bf16.msra.mxu0 0
        %1107 = vmatprep.subr.bf16.mxu0 0
        %1108 = vmatpush1.bf16.msra.mxu0 0
        %1109 = vmatprep.subr.bf16.mxu0 0
        %1110 = vmatpush1.bf16.msra.mxu0 0
        %1111 = vmatprep.subr.bf16.mxu0 0
        %1112 = vmatpush1.bf16.msra.mxu0 0
        %1113 = vmatprep.subr.bf16.mxu0 0
        %1114 = vmatpush1.bf16.msra.mxu0 0
        %1115 = vmatprep.subr.bf16.mxu0 0
        %1116 = vmatpush1.bf16.msra.mxu0 0
        %1117 = vmatprep.subr.bf16.mxu0 0
        %1118 = vmatpush1.bf16.msra.mxu0 0
        %1119 = vmatprep.mubr.bf16.mxu0 0
        %1120 = vmatmul.mubr.bf16.gmra.mrb[0].mxu0 %v1081
        %v1121 = vpop.f32.mrb[0].mxu0
        %v1122 = vadd.f32 0.0, %v1121
        %v1123 = vpop.f32.mrb[0].mxu0
        %v1124 = vpop.f32.mrb[0].mxu0
        %v1125 = vpop.f32.mrb[0].mxu0
        %1126 = vdwg.mxu0
        %v1128 = vsel %vm839, %v1073, 0
        %v1131 = vsel %vm1083, %v1077, 0
        %1133 = vmatprep.subr.bf16.mxu0 0
        %1134 = vmatpush1.bf16.msra.mxu0 %v1131
        %1135 = vmatprep.subr.bf16.mxu0 0
        %1136 = vmatpush1.bf16.msra.mxu0 0
        %1137 = vmatprep.subr.bf16.mxu0 0
        %1138 = vmatpush1.bf16.msra.mxu0 0
        %1139 = vmatprep.subr.bf16.mxu0 0
        %1140 = vmatpush1.bf16.msra.mxu0 0
        %1141 = vmatprep.subr.bf16.mxu0 0
        %1142 = vmatpush1.bf16.msra.mxu0 0
        %1143 = vmatprep.subr.bf16.mxu0 0
        %1144 = vmatpush1.bf16.msra.mxu0 0
        %1145 = vmatprep.subr.bf16.mxu0 0
        %1146 = vmatpush1.bf16.msra.mxu0 0
        %1147 = vmatprep.subr.bf16.mxu0 0
        %1148 = vmatpush1.bf16.msra.mxu0 0
        %1149 = vmatprep.subr.bf16.mxu0 0
        %1150 = vmatpush1.bf16.msra.mxu0 0
        %1151 = vmatprep.subr.bf16.mxu0 0
        %1152 = vmatpush1.bf16.msra.mxu0 0
        %1153 = vmatprep.subr.bf16.mxu0 0
        %1154 = vmatpush1.bf16.msra.mxu0 0
        %1155 = vmatprep.subr.bf16.mxu0 0
        %1156 = vmatpush1.bf16.msra.mxu0 0
        %1157 = vmatprep.subr.bf16.mxu0 0
        %1158 = vmatpush1.bf16.msra.mxu0 0
        %1159 = vmatprep.subr.bf16.mxu0 0
        %1160 = vmatpush1.bf16.msra.mxu0 0
        %1161 = vmatprep.subr.bf16.mxu0 0
        %1162 = vmatpush1.bf16.msra.mxu0 0
        %1163 = vmatprep.subr.bf16.mxu0 0
        %1164 = vmatpush1.bf16.msra.mxu0 0
        %1165 = vmatprep.mubr.bf16.mxu0 0
        %1166 = vmatmul.mubr.bf16.gmra.mrb[0].mxu0 %v1128
        %v1167 = vpop.f32.mrb[0].mxu0
        %v1168 = vadd.f32 0.0, %v1167
        %v1169 = vpop.f32.mrb[0].mxu0
        %v1170 = vpop.f32.mrb[0].mxu0
        %v1171 = vpop.f32.mrb[0].mxu0
        %1172 = vdwg.mxu0
        %v1174 = vsel %vm839, %v1074, 0
        %v1177 = vsel %vm1083, %v1078, 0
        %1179 = vmatprep.subr.bf16.mxu0 0
        %1180 = vmatpush1.bf16.msra.mxu0 %v1177
        %1181 = vmatprep.subr.bf16.mxu0 0
        %1182 = vmatpush1.bf16.msra.mxu0 0
        %1183 = vmatprep.subr.bf16.mxu0 0
        %1184 = vmatpush1.bf16.msra.mxu0 0
        %1185 = vmatprep.subr.bf16.mxu0 0
        %1186 = vmatpush1.bf16.msra.mxu0 0
        %1187 = vmatprep.subr.bf16.mxu0 0
        %1188 = vmatpush1.bf16.msra.mxu0 0
        %1189 = vmatprep.subr.bf16.mxu0 0
        %1190 = vmatpush1.bf16.msra.mxu0 0
        %1191 = vmatprep.subr.bf16.mxu0 0
        %1192 = vmatpush1.bf16.msra.mxu0 0
        %1193 = vmatprep.subr.bf16.mxu0 0
        %1194 = vmatpush1.bf16.msra.mxu0 0
        %1195 = vmatprep.subr.bf16.mxu0 0
        %1196 = vmatpush1.bf16.msra.mxu0 0
        %1197 = vmatprep.subr.bf16.mxu0 0
        %1198 = vmatpush1.bf16.msra.mxu0 0
        %1199 = vmatprep.subr.bf16.mxu0 0
        %1200 = vmatpush1.bf16.msra.mxu0 0
        %1201 = vmatprep.subr.bf16.mxu0 0
        %1202 = vmatpush1.bf16.msra.mxu0 0
        %1203 = vmatprep.subr.bf16.mxu0 0
        %1204 = vmatpush1.bf16.msra.mxu0 0
        %1205 = vmatprep.subr.bf16.mxu0 0
        %1206 = vmatpush1.bf16.msra.mxu0 0
        %1207 = vmatprep.subr.bf16.mxu0 0
        %1208 = vmatpush1.bf16.msra.mxu0 0
        %1209 = vmatprep.subr.bf16.mxu0 0
        %1210 = vmatpush1.bf16.msra.mxu0 0
        %1211 = vmatprep.mubr.bf16.mxu0 0
        %1212 = vmatmul.mubr.bf16.gmra.mrb[0].mxu0 %v1174
        %v1213 = vpop.f32.mrb[0].mxu0
        %v1214 = vadd.f32 0.0, %v1213
        %v1215 = vpop.f32.mrb[0].mxu0
        %v1216 = vpop.f32.mrb[0].mxu0
        %v1217 = vpop.f32.mrb[0].mxu0
        %1218 = vdwg.mxu0
        %v1220 = vsel %vm839, %v1075, 0
        %v1223 = vsel %vm1083, %v1079, 0
        %1225 = vmatprep.subr.bf16.mxu0 0
        %1226 = vmatpush1.bf16.msra.mxu0 %v1223
        %1227 = vmatprep.subr.bf16.mxu0 0
        %1228 = vmatpush1.bf16.msra.mxu0 0
        %1229 = vmatprep.subr.bf16.mxu0 0
        %1230 = vmatpush1.bf16.msra.mxu0 0
        %1231 = vmatprep.subr.bf16.mxu0 0
        %1232 = vmatpush1.bf16.msra.mxu0 0
        %1233 = vmatprep.subr.bf16.mxu0 0
        %1234 = vmatpush1.bf16.msra.mxu0 0
        %1235 = vmatprep.subr.bf16.mxu0 0
        %1236 = vmatpush1.bf16.msra.mxu0 0
        %1237 = vmatprep.subr.bf16.mxu0 0
        %1238 = vmatpush1.bf16.msra.mxu0 0
        %1239 = vmatprep.subr.bf16.mxu0 0
        %1240 = vmatpush1.bf16.msra.mxu0 0
        %1241 = vmatprep.subr.bf16.mxu0 0
        %1242 = vmatpush1.bf16.msra.mxu0 0
        %1243 = vmatprep.subr.bf16.mxu0 0
        %1244 = vmatpush1.bf16.msra.mxu0 0
        %1245 = vmatprep.subr.bf16.mxu0 0
        %1246 = vmatpush1.bf16.msra.mxu0 0
        %1247 = vmatprep.subr.bf16.mxu0 0
        %1248 = vmatpush1.bf16.msra.mxu0 0
        %1249 = vmatprep.subr.bf16.mxu0 0
        %1250 = vmatpush1.bf16.msra.mxu0 0
        %1251 = vmatprep.subr.bf16.mxu0 0
        %1252 = vmatpush1.bf16.msra.mxu0 0
        %1253 = vmatprep.subr.bf16.mxu0 0
        %1254 = vmatpush1.bf16.msra.mxu0 0
        %1255 = vmatprep.subr.bf16.mxu0 0
        %1256 = vmatpush1.bf16.msra.mxu0 0
        %1257 = vmatprep.mubr.bf16.mxu0 0
        %1258 = vmatmul.mubr.bf16.gmra.mrb[0].mxu0 %v1220
        %v1259 = vpop.f32.mrb[0].mxu0
        %v1260 = vadd.f32 0.0, %v1259
        %v1261 = vpop.f32.mrb[0].mxu0
        %v1262 = vpop.f32.mrb[0].mxu0
        %v1263 = vpop.f32.mrb[0].mxu0
        %1264 = vdwg.mxu0
        %v1265 = vpack.c.bf16 %v1122, %v1122
        %v1266 = vpack.c.bf16 %v1168, %v1168
        %v1267 = vpack.c.bf16 %v1214, %v1214
        %v1268 = vpack.c.bf16 %v1260, %v1260
        %v1269 = vld [vmem:[%s9] sm:$0xf]
        %v1270 = vld [vmem:[%s9 + $0x4] sm:$0xf]
        %v1271 = vld [vmem:[%s9 + $0x8] sm:$0xf]
        %v1272 = vld [vmem:[%s9 + $0xc] sm:$0xf]
        %v1274 = vsel %vm839, %v1265, 0
        %v1277 = vsel %vm1083, %v1269, 0
        %1279 = vmatprep.subr.bf16.mxu0 0
        %1280 = vmatpush1.bf16.msra.mxu0 %v1277
        %1281 = vmatprep.subr.bf16.mxu0 0
        %1282 = vmatpush1.bf16.msra.mxu0 0
        %1283 = vmatprep.subr.bf16.mxu0 0
        %1284 = vmatpush1.bf16.msra.mxu0 0
        %1285 = vmatprep.subr.bf16.mxu0 0
        %1286 = vmatpush1.bf16.msra.mxu0 0
        %1287 = vmatprep.subr.bf16.mxu0 0
        %1288 = vmatpush1.bf16.msra.mxu0 0
        %1289 = vmatprep.subr.bf16.mxu0 0
        %1290 = vmatpush1.bf16.msra.mxu0 0
        %1291 = vmatprep.subr.bf16.mxu0 0
        %1292 = vmatpush1.bf16.msra.mxu0 0
        %1293 = vmatprep.subr.bf16.mxu0 0
        %1294 = vmatpush1.bf16.msra.mxu0 0
        %1295 = vmatprep.subr.bf16.mxu0 0
        %1296 = vmatpush1.bf16.msra.mxu0 0
        %1297 = vmatprep.subr.bf16.mxu0 0
        %1298 = vmatpush1.bf16.msra.mxu0 0
        %1299 = vmatprep.subr.bf16.mxu0 0
        %1300 = vmatpush1.bf16.msra.mxu0 0
        %1301 = vmatprep.subr.bf16.mxu0 0
        %1302 = vmatpush1.bf16.msra.mxu0 0
        %1303 = vmatprep.subr.bf16.mxu0 0
        %1304 = vmatpush1.bf16.msra.mxu0 0
        %1305 = vmatprep.subr.bf16.mxu0 0
        %1306 = vmatpush1.bf16.msra.mxu0 0
        %1307 = vmatprep.subr.bf16.mxu0 0
        %1308 = vmatpush1.bf16.msra.mxu0 0
        %1309 = vmatprep.subr.bf16.mxu0 0
        %1310 = vmatpush1.bf16.msra.mxu0 0
        %1311 = vmatprep.mubr.bf16.mxu0 0
        %1312 = vmatmul.mubr.bf16.gmra.mrb[0].mxu0 %v1274
        %v1313 = vpop.f32.mrb[0].mxu0
        %v1314 = vadd.f32 0.0, %v1313
        %v1315 = vpop.f32.mrb[0].mxu0
        %v1316 = vpop.f32.mrb[0].mxu0
        %v1317 = vpop.f32.mrb[0].mxu0
        %1318 = vdwg.mxu0
        %v1320 = vsel %vm839, %v1266, 0
        %v1323 = vsel %vm1083, %v1270, 0
        %1325 = vmatprep.subr.bf16.mxu0 0
        %1326 = vmatpush1.bf16.msra.mxu0 %v1323
        %1327 = vmatprep.subr.bf16.mxu0 0
        %1328 = vmatpush1.bf16.msra.mxu0 0
        %1329 = vmatprep.subr.bf16.mxu0 0
        %1330 = vmatpush1.bf16.msra.mxu0 0
        %1331 = vmatprep.subr.bf16.mxu0 0
        %1332 = vmatpush1.bf16.msra.mxu0 0
        %1333 = vmatprep.subr.bf16.mxu0 0
        %1334 = vmatpush1.bf16.msra.mxu0 0
        %1335 = vmatprep.subr.bf16.mxu0 0
        %1336 = vmatpush1.bf16.msra.mxu0 0
        %1337 = vmatprep.subr.bf16.mxu0 0
        %1338 = vmatpush1.bf16.msra.mxu0 0
        %1339 = vmatprep.subr.bf16.mxu0 0
        %1340 = vmatpush1.bf16.msra.mxu0 0
        %1341 = vmatprep.subr.bf16.mxu0 0
        %1342 = vmatpush1.bf16.msra.mxu0 0
        %1343 = vmatprep.subr.bf16.mxu0 0
        %1344 = vmatpush1.bf16.msra.mxu0 0
        %1345 = vmatprep.subr.bf16.mxu0 0
        %1346 = vmatpush1.bf16.msra.mxu0 0
        %1347 = vmatprep.subr.bf16.mxu0 0
        %1348 = vmatpush1.bf16.msra.mxu0 0
        %1349 = vmatprep.subr.bf16.mxu0 0
        %1350 = vmatpush1.bf16.msra.mxu0 0
        %1351 = vmatprep.subr.bf16.mxu0 0
        %1352 = vmatpush1.bf16.msra.mxu0 0
        %1353 = vmatprep.subr.bf16.mxu0 0
        %1354 = vmatpush1.bf16.msra.mxu0 0
        %1355 = vmatprep.subr.bf16.mxu0 0
        %1356 = vmatpush1.bf16.msra.mxu0 0
        %1357 = vmatprep.mubr.bf16.mxu0 0
        %1358 = vmatmul.mubr.bf16.gmra.mrb[0].mxu0 %v1320
        %v1359 = vpop.f32.mrb[0].mxu0
        %v1360 = vadd.f32 0.0, %v1359
        %v1361 = vpop.f32.mrb[0].mxu0
        %v1362 = vpop.f32.mrb[0].mxu0
        %v1363 = vpop.f32.mrb[0].mxu0
        %1364 = vdwg.mxu0
        %v1366 = vsel %vm839, %v1267, 0
        %v1369 = vsel %vm1083, %v1271, 0
        %1371 = vmatprep.subr.bf16.mxu0 0
        %1372 = vmatpush1.bf16.msra.mxu0 %v1369
        %1373 = vmatprep.subr.bf16.mxu0 0
        %1374 = vmatpush1.bf16.msra.mxu0 0
        %1375 = vmatprep.subr.bf16.mxu0 0
        %1376 = vmatpush1.bf16.msra.mxu0 0
        %1377 = vmatprep.subr.bf16.mxu0 0
        %1378 = vmatpush1.bf16.msra.mxu0 0
        %1379 = vmatprep.subr.bf16.mxu0 0
        %1380 = vmatpush1.bf16.msra.mxu0 0
        %1381 = vmatprep.subr.bf16.mxu0 0
        %1382 = vmatpush1.bf16.msra.mxu0 0
        %1383 = vmatprep.subr.bf16.mxu0 0
        %1384 = vmatpush1.bf16.msra.mxu0 0
        %1385 = vmatprep.subr.bf16.mxu0 0
        %1386 = vmatpush1.bf16.msra.mxu0 0
        %1387 = vmatprep.subr.bf16.mxu0 0
        %1388 = vmatpush1.bf16.msra.mxu0 0
        %1389 = vmatprep.subr.bf16.mxu0 0
        %1390 = vmatpush1.bf16.msra.mxu0 0
        %1391 = vmatprep.subr.bf16.mxu0 0
        %1392 = vmatpush1.bf16.msra.mxu0 0
        %1393 = vmatprep.subr.bf16.mxu0 0
        %1394 = vmatpush1.bf16.msra.mxu0 0
        %1395 = vmatprep.subr.bf16.mxu0 0
        %1396 = vmatpush1.bf16.msra.mxu0 0
        %1397 = vmatprep.subr.bf16.mxu0 0
        %1398 = vmatpush1.bf16.msra.mxu0 0
        %1399 = vmatprep.subr.bf16.mxu0 0
        %1400 = vmatpush1.bf16.msra.mxu0 0
        %1401 = vmatprep.subr.bf16.mxu0 0
        %1402 = vmatpush1.bf16.msra.mxu0 0
        %1403 = vmatprep.mubr.bf16.mxu0 0
        %1404 = vmatmul.mubr.bf16.gmra.mrb[0].mxu0 %v1366
        %v1405 = vpop.f32.mrb[0].mxu0
        %v1406 = vadd.f32 0.0, %v1405
        %v1407 = vpop.f32.mrb[0].mxu0
        %v1408 = vpop.f32.mrb[0].mxu0
        %v1409 = vpop.f32.mrb[0].mxu0
        %1410 = vdwg.mxu0
        %v1412 = vsel %vm839, %v1268, 0
        %v1415 = vsel %vm1083, %v1272, 0
        %1417 = vmatprep.subr.bf16.mxu0 0
        %1418 = vmatpush1.bf16.msra.mxu0 %v1415
        %1419 = vmatprep.subr.bf16.mxu0 0
        %1420 = vmatpush1.bf16.msra.mxu0 0
        %1421 = vmatprep.subr.bf16.mxu0 0
        %1422 = vmatpush1.bf16.msra.mxu0 0
        %1423 = vmatprep.subr.bf16.mxu0 0
        %1424 = vmatpush1.bf16.msra.mxu0 0
        %1425 = vmatprep.subr.bf16.mxu0 0
        %1426 = vmatpush1.bf16.msra.mxu0 0
        %1427 = vmatprep.subr.bf16.mxu0 0
        %1428 = vmatpush1.bf16.msra.mxu0 0
        %1429 = vmatprep.subr.bf16.mxu0 0
        %1430 = vmatpush1.bf16.msra.mxu0 0
        %1431 = vmatprep.subr.bf16.mxu0 0
        %1432 = vmatpush1.bf16.msra.mxu0 0
        %1433 = vmatprep.subr.bf16.mxu0 0
        %1434 = vmatpush1.bf16.msra.mxu0 0
        %1435 = vmatprep.subr.bf16.mxu0 0
        %1436 = vmatpush1.bf16.msra.mxu0 0
        %1437 = vmatprep.subr.bf16.mxu0 0
        %1438 = vmatpush1.bf16.msra.mxu0 0
        %1439 = vmatprep.subr.bf16.mxu0 0
        %1440 = vmatpush1.bf16.msra.mxu0 0
        %1441 = vmatprep.subr.bf16.mxu0 0
        %1442 = vmatpush1.bf16.msra.mxu0 0
        %1443 = vmatprep.subr.bf16.mxu0 0
        %1444 = vmatpush1.bf16.msra.mxu0 0
        %1445 = vmatprep.subr.bf16.mxu0 0
        %1446 = vmatpush1.bf16.msra.mxu0 0
        %1447 = vmatprep.subr.bf16.mxu0 0
        %1448 = vmatpush1.bf16.msra.mxu0 0
        %1449 = vmatprep.mubr.bf16.mxu0 0
        %1450 = vmatmul.mubr.bf16.gmra.mrb[0].mxu0 %v1412
        %v1451 = vpop.f32.mrb[0].mxu0
        %v1452 = vadd.f32 0.0, %v1451
        %v1453 = vpop.f32.mrb[0].mxu0
        %v1454 = vpop.f32.mrb[0].mxu0
        %v1455 = vpop.f32.mrb[0].mxu0
        %1456 = vdwg.mxu0
        %v1457 = vadd.f32 %v1314, %v1360
        %v1458 = vadd.f32 %v1457, %v1406
        %v1459 = vadd.f32 %v1458, %v1452
        %v1460 = vld [vmem:[%s10] sm:$0x1]
        %v1462 = vlaneseq
        %v1463 = vshrl.u32 %v1462, 7
        %v1464 = vsub.s32 0, %v1463
        %v1465 = vrot.slane %v1460, %v1464
        %v1467 = vadd.f32 %v1459, %v1465
        %1468 = vst.msk [vmem:[%s564] sm:$0xff] %vm773, %v1467
        %s1469 = sand.u32 %s308, 1
        %s1470 = scalar_lea.sflag [#allocation6], %s1469
        %s1471 = sand.u32 %s308, 1
        %s1472 = smul.addr %s1471, 8
        %s1473 = scalar_lea.vmem [#allocation15], %s1472
        %s1474 = sand.u32 %s336, 1
        %s1475 = scalar_lea.sflag [#allocation17], %s1474
        %s1476 = sand.u32 %s336, 1
        %s1477 = smul.addr %s1476, 32
        %s1478 = scalar_lea.vmem [#allocation16], %s1477
        // Predicated region
        $region93: #{tpu_custom_call.1} parent=63 // pred_check
          %p1479 = pneg %p318
        $region94: #{tpu_custom_call.1} parent=63 // pred_check_branch
          %1481 = sbr.rel (%p1479) target = $region96
        $region95: #{tpu_custom_call.1} parent=63 // pred_region
          %s1483 = ssub.s32 128, 128
          %1484 = vsyncadd %s1470, %s1483
          %s1485 = sadd.s32 %s43, %s42
          %s1486 = smul.addr %s1485, 128
          %s1487 = scalar_lea.hbm %s11, %s1486
          %s1489 = sshll.u32 %s1473, 4
          %s1490 = int_to_ptr.vmem [resolvable:$true] %s1489
          %1492 = dma.vmem_to_hbm [thread:$0]  %s1490, 128, %s1487, %s1470
        $region96: #{tpu_custom_call.1} parent=63 // pred_fallthru
          _
        // Predicated region
        $region97: #{tpu_custom_call.1} parent=63 // pred_check
          %p1493 = pneg %p346
        $region98: #{tpu_custom_call.1} parent=63 // pred_check_branch
          %1495 = sbr.rel (%p1493) target = $region100
        $region99: #{tpu_custom_call.1} parent=63 // pred_region
          %s1497 = ssub.s32 512, 512
          %1498 = vsyncadd %s1475, %s1497
          %s1499 = smul.addr %s42, 4
          %s1500 = sadd.s32 %s43, %s1499
          %s1501 = smul.addr %s1500, 128
          %s1502 = scalar_lea.hbm %s12, %s1501
          %s1503 = sshll.u32 %s1478, 4
          %s1504 = int_to_ptr.vmem [resolvable:$true] %s1503
          %1509 = dma.vmem_to_hbm [thread:$0]  %s1504, 512, %s1502, %s1475, 128, 128, 8
        $region100: #{tpu_custom_call.1} parent=63 // pred_fallthru
          _
      $region64: #{tpu_custom_call.1} parent=5 // pred_fallthru
        _
      %p1510 = scmp.le.s32.totalorder 2, %s33
      // Predicated region
      $region101: #{tpu_custom_call.1} parent=5 // pred_check
        %p1511 = pneg %p1510
      $region102: #{tpu_custom_call.1} parent=5 // pred_check_branch
        %1513 = sbr.rel (%p1511) target = $region104
      $region103: #{tpu_custom_call.1} parent=5 // pred_region
        %s1514 = ssub.s32 %s33, 2
        // Predicated region
        $region105: #{tpu_custom_call.1} parent=103 // pred_check
          %p1515 = pneg %p324
        $region106: #{tpu_custom_call.1} parent=103 // pred_check_branch
          %1517 = sbr.rel (%p1515) target = $region108
        $region107: #{tpu_custom_call.1} parent=103 // pred_region
          %s1518 = sand.u32 %s309, 1
          %s1519 = scalar_lea.sflag [#allocation6], %s1518
          %s1520 = sand.u32 %s309, 1
          %s1521 = smul.addr %s1520, 8
          %s1522 = scalar_lea.vmem [#allocation15], %s1521
          %1523 = dma.done %s1519, 128
        $region108: #{tpu_custom_call.1} parent=103 // pred_fallthru
          _
        // Predicated region
        $region109: #{tpu_custom_call.1} parent=103 // pred_check
          %p1524 = pneg %p352
        $region110: #{tpu_custom_call.1} parent=103 // pred_check_branch
          %1526 = sbr.rel (%p1524) target = $region112
        $region111: #{tpu_custom_call.1} parent=103 // pred_region
          %s1527 = sand.u32 %s337, 1
          %s1528 = scalar_lea.sflag [#allocation17], %s1527
          %s1529 = sand.u32 %s337, 1
          %s1530 = smul.addr %s1529, 32
          %s1531 = scalar_lea.vmem [#allocation16], %s1530
          %1532 = dma.done %s1528, 512
        $region112: #{tpu_custom_call.1} parent=103 // pred_fallthru
          _
      $region104: #{tpu_custom_call.1} parent=5 // pred_fallthru
        _
    $region6: #{tpu_custom_call.1} parent=1 // loop_footer
      %s37 = sadd.s32 1, %s33
    $region7: #{tpu_custom_call.1} parent=1 // loop_footer_branch
      %32 = sbr.rel target = $region3
    $region8: #{tpu_custom_call.1} parent=1 // loop_exit
      _
    %1533 = vsyncpa [#allocation5], 1
    %s1534 = scalar_lea.sflag [#allocation5], 1
    %1535 = vsyncpa %s1534, 1
    %1536 = vsyncpa [#allocation8], 1
    %s1537 = scalar_lea.sflag [#allocation8], 1
    %1538 = vsyncpa %s1537, 1
    %1539 = vsyncpa [#allocation11], 1
    %1540 = vsyncpa [#allocation14], 1
    %1541 = vsyncpa [#allocation6], 1
    %s1542 = scalar_lea.sflag [#allocation6], 1
    %1543 = vsyncpa %s1542, 1
    %1544 = vsyncpa [#allocation17], 1
    %s1545 = scalar_lea.sflag [#allocation17], 1
    %1546 = vsyncpa %s1545, 1

</llo_original>
